<compile_context>
chip_gen: v5e
topology: v5e:2x2
jax: 0.10.0
libtpu: 0.0.40
codegen_flags: <defaults>
</compile_context>

<pallas_src>
import math
import functools

import jax
import jax.numpy as jnp
from jax.experimental import pallas as pl
from jax.experimental.pallas import tpu as pltpu

# ---------------- model hyper-parameters (small, consistent w/ forward) ------
HIDDEN = 32
VOCAB = 64
N_LAYERS = 2
N_HEADS = 4
HEAD_DIM = HIDDEN // N_HEADS
FFN = 64
MAX_POS = 32
LN_EPS = 1e-12

# Order in which stacked weights are passed to the fused kernels.
_WEIGHT_NAMES = (
    "wqkv", "bqkv", "wo", "bo", "ln1_g", "ln1_b",
    "w1", "b1", "w2", "b2", "ln2_g", "ln2_b",
    "emb_ln_g", "emb_ln_b", "cls_w", "cls_b",
)


# ---------------- in-kernel helpers (operate on values, not refs) ------------
def _layernorm(x, g, b):
    mu = jnp.mean(x, axis=-1, keepdims=True)
    var = jnp.mean(jnp.square(x - mu), axis=-1, keepdims=True)
    return (x - mu) * jax.lax.rsqrt(var + LN_EPS) * g + b


def _gelu(x):
    # TODO(synk): HF BERT uses exact erf-GELU; tanh approximation used here.
    c = math.sqrt(2.0 / math.pi)
    return 0.5 * x * (1.0 + jnp.tanh(c * (x + 0.044715 * x * x * x)))


def _encoder_logits(h0_ref, bias_ref, w):
    """Run the whole encoder + classifier for one batch element.

    h0_ref : (1, S, H) embedded inputs (word + pos + type), pre-LayerNorm.
    bias_ref: (1, 1, S) additive attention bias (0 / -1e9 per key position).
    w      : dict of VMEM-resident weight refs (see _WEIGHT_NAMES).
    Returns logits [S, VOCAB] (f32).
    """
    S = h0_ref.shape[1]
    scale = 1.0 / math.sqrt(HEAD_DIM)

    h = _layernorm(h0_ref[0], w["emb_ln_g"][...], w["emb_ln_b"][...])   # [S, H]
    bias = bias_ref[0]                                                  # [1, S]

    for l in range(N_LAYERS):
        # ---- fused QKV projection: one MXU pass, 96-wide output ----
        qkv = (jnp.dot(h, w["wqkv"][l], preferred_element_type=jnp.float32)
               + w["bqkv"][l])                                          # [S, 3H]

        # ---- multi-head self-attention, all in VMEM ----
        wo_l = w["wo"][l]                                               # [H, H]
        attn = jnp.zeros((S, HIDDEN), jnp.float32)
        for hh in range(N_HEADS):
            lo = hh * HEAD_DIM
            hi = lo + HEAD_DIM
            qh = qkv[:, lo:hi]                                          # [S, hd]
            kh = qkv[:, HIDDEN + lo:HIDDEN + hi]                        # [S, hd]
            vh = qkv[:, 2 * HIDDEN + lo:2 * HIDDEN + hi]                # [S, hd]

            s = jax.lax.dot_general(
                qh, kh, (((1,), (1,)), ((), ())),
                preferred_element_type=jnp.float32) * scale             # [S, S]
            s = s + bias
            m = jnp.max(s, axis=-1, keepdims=True)
            p = jnp.exp(s - m)
            p = p * pl.reciprocal(jnp.sum(p, axis=-1, keepdims=True),
                                  approx=True)
            ctx = jnp.dot(p, vh, preferred_element_type=jnp.float32)    # [S, hd]
            # fold the per-head output projection in; avoids concatenating
            # heads along lanes.
            attn = attn + jnp.dot(ctx, wo_l[lo:hi, :],
                                  preferred_element_type=jnp.float32)   # [S, H]
        attn = attn + w["bo"][l]
        h = _layernorm(attn + h, w["ln1_g"][l], w["ln1_b"][l])

        # ---- feed-forward ----
        ff = (jnp.dot(h, w["w1"][l], preferred_element_type=jnp.float32)
              + w["b1"][l])
        ff = _gelu(ff)
        ff = (jnp.dot(ff, w["w2"][l], preferred_element_type=jnp.float32)
              + w["b2"][l])
        h = _layernorm(ff + h, w["ln2_g"][l], w["ln2_b"][l])

    logits = (jnp.dot(h, w["cls_w"][...], preferred_element_type=jnp.float32)
              + w["cls_b"][...])                                        # [S, V]
    return logits


# ---------------- fused kernels (one pallas_call per branch) -----------------
def _infer_kernel(h0_ref, bias_ref, *rest):
    w_refs, out_ref = rest[:-1], rest[-1]
    w = dict(zip(_WEIGHT_NAMES, w_refs))
    logits = _encoder_logits(h0_ref, bias_ref, w)
    m = jnp.max(logits, axis=-1, keepdims=True)
    e = jnp.exp(logits - m)
    probs = e * pl.reciprocal(jnp.sum(e, axis=-1, keepdims=True), approx=True)
    # NOTE: VOCAB=64 < 128 lanes -> masked stores; at real vocab sizes write a
    # lane-dense (>=128 wide) slab instead.
    out_ref[0] = probs


def _loss_kernel(h0_ref, bias_ref, labels_ref, *rest):
    w_refs, out_ref = rest[:-1], rest[-1]
    w = dict(zip(_WEIGHT_NAMES, w_refs))
    logits = _encoder_logits(h0_ref, bias_ref, w)                        # [S, V]
    m = jnp.max(logits, axis=-1, keepdims=True)
    lse = jnp.log(jnp.sum(jnp.exp(logits - m), axis=-1, keepdims=True)) + m
    logp = logits - lse
    labels = labels_ref[0]                                               # [S, 1]
    col = jax.lax.broadcasted_iota(jnp.int32, logp.shape, 1)             # [S, V]
    picked = jnp.sum(jnp.where(col == labels, logp, 0.0),
                     axis=-1, keepdims=True)                             # [S, 1]
    out_ref[0] = -picked                                                 # per-row NLL


# ---------------- pallas_call wrappers ----------------------------------------
def _resident_spec(arr):
    """Whole array resident in VMEM across all grid steps."""
    zeros = (0,) * arr.ndim
    return pl.BlockSpec(arr.shape, lambda b, _z=zeros: _z)


def language_model_forward(params, x, y=None, attention_mask=None):
    B, S = x.shape
    if attention_mask is None:
        attention_mask = jnp.ones((B, S), jnp.float32)
    attn_bias = ((1.0 - attention_mask.astype(jnp.float32)) * -1e9
                 ).reshape(B, 1, S)                                      # [B,1,S]

    # embedding gathers: plain-JAX glue feeding the fused kernel
    h0 = (params["word_emb"][x]
          + params["pos_emb"][:S][None, :, :]
          + params["type_emb"][0][None, None, :]).astype(jnp.float32)    # [B,S,H]

    w_in = [params[n] for n in _WEIGHT_NAMES]
    w_specs = [_resident_spec(a) for a in w_in]
    cparams = pltpu.CompilerParams(dimension_semantics=("parallel",))

    if y is not None:
        labels = y.reshape(B, S, 1).astype(jnp.int32)
        nll = pl.pallas_call(
            _loss_kernel,
            grid=(B,),
            in_specs=[pl.BlockSpec((1, S, HIDDEN), lambda b: (b, 0, 0)),
                      pl.BlockSpec((1, 1, S), lambda b: (b, 0, 0)),
                      pl.BlockSpec((1, S, 1), lambda b: (b, 0, 0))] + w_specs,
            out_specs=pl.BlockSpec((1, S, 1), lambda b: (b, 0, 0)),
            out_shape=jax.ShapeDtypeStruct((B, S, 1), jnp.float32),
            compiler_params=cparams,
        )(h0, attn_bias, labels, *w_in)
        # mean over all B*S tokens (matches F.cross_entropy default reduction)
        return jnp.sum(nll) / (B * S)

    probs = pl.pallas_call(
        _infer_kernel,
        grid=(B,),
        in_specs=[pl.BlockSpec((1, S, HIDDEN), lambda b: (b, 0, 0)),
                  pl.BlockSpec((1, 1, S), lambda b: (b, 0, 0))] + w_specs,
        out_specs=pl.BlockSpec((1, S, VOCAB), lambda b: (b, 0, 0)),
        out_shape=jax.ShapeDtypeStruct((B, S, VOCAB), jnp.float32),
        compiler_params=cparams,
    )(h0, attn_bias, *w_in)
    return probs


# ---------------- parameter init (deterministic, synthetic) -------------------
def init_params(key):
    std = 0.02
    keys = iter(jax.random.split(key, 32))

    def nrm(shape):
        return std * jax.random.normal(next(keys), shape, jnp.float32)

    wqkv, wo, w1, w2 = [], [], [], []
    for _ in range(N_LAYERS):
        wqkv.append(nrm((HIDDEN, 3 * HIDDEN)))   # [wq | wk | wv], torch weight^T
        wo.append(nrm((HIDDEN, HIDDEN)))
        w1.append(nrm((HIDDEN, FFN)))
        w2.append(nrm((FFN, HIDDEN)))

    L = N_LAYERS
    return {
        "word_emb": nrm((VOCAB, HIDDEN)),
        "pos_emb": nrm((MAX_POS, HIDDEN)),
        "type_emb": nrm((2, HIDDEN)),
        "wqkv": jnp.stack(wqkv),                          # [L, H, 3H]
        "bqkv": jnp.zeros((L, 1, 3 * HIDDEN), jnp.float32),
        "wo": jnp.stack(wo),                              # [L, H, H]
        "bo": jnp.zeros((L, 1, HIDDEN), jnp.float32),
        "ln1_g": jnp.ones((L, 1, HIDDEN), jnp.float32),
        "ln1_b": jnp.zeros((L, 1, HIDDEN), jnp.float32),
        "w1": jnp.stack(w1),                              # [L, H, FFN]
        "b1": jnp.zeros((L, 1, FFN), jnp.float32),
        "w2": jnp.stack(w2),                              # [L, FFN, H]
        "b2": jnp.zeros((L, 1, HIDDEN), jnp.float32),
        "ln2_g": jnp.ones((L, 1, HIDDEN), jnp.float32),
        "ln2_b": jnp.zeros((L, 1, HIDDEN), jnp.float32),
        "emb_ln_g": jnp.ones((1, HIDDEN), jnp.float32),
        "emb_ln_b": jnp.zeros((1, HIDDEN), jnp.float32),
        "cls_w": nrm((HIDDEN, VOCAB)),                    # torch nn.Linear weight^T
        "cls_b": jnp.zeros((1, VOCAB), jnp.float32),
    }


# ---------------- demo --------------------------------------------------------
if __name__ == "__main__":
    key = jax.random.PRNGKey(0)
    k_par, k_x, k_y = jax.random.split(key, 3)

    params = init_params(k_par)

    B, S = 2, 8
    x = jax.random.randint(k_x, (B, S), 0, VOCAB, dtype=jnp.int32)
    y = jax.random.randint(k_y, (B, S), 0, VOCAB, dtype=jnp.int32)
    attention_mask = jnp.ones((B, S), jnp.int32)

    infer_fn = jax.jit(lambda p, xx: language_model_forward(p, xx))
    loss_fn = jax.jit(
        lambda p, xx, yy, mm: language_model_forward(p, xx, y=yy, attention_mask=mm))

    # inference branch: softmax probabilities [B, S, VOCAB]
    probs = jax.block_until_ready(infer_fn(params, x))
    assert probs.shape == (B, S, VOCAB)
    assert bool(jnp.all(jnp.isfinite(probs)))
    # approx-reciprocal softmax: row sums are ~1 within the EUP approx error
    assert bool(jnp.allclose(jnp.sum(probs, axis=-1), 1.0, atol=5e-3))

    # training branch: scalar cross-entropy loss
    loss = jax.block_until_ready(loss_fn(params, x, y, attention_mask))
    assert loss.shape == ()
    assert bool(jnp.isfinite(loss))

    print("KERNEL_OK")
</pallas_src>

<mosaic_0001>
module attributes {stable_mosaic.version = 11 : i64} {
  func.func @_infer_kernel(%arg0: i32, %arg1: memref<1x8x32xf32, #tpu.memory_space<vmem>>, %arg2: memref<1x1x8xf32, #tpu.memory_space<vmem>>, %arg3: memref<2x32x96xf32, #tpu.memory_space<vmem>>, %arg4: memref<2x1x96xf32, #tpu.memory_space<vmem>>, %arg5: memref<2x32x32xf32, #tpu.memory_space<vmem>>, %arg6: memref<2x1x32xf32, #tpu.memory_space<vmem>>, %arg7: memref<2x1x32xf32, #tpu.memory_space<vmem>>, %arg8: memref<2x1x32xf32, #tpu.memory_space<vmem>>, %arg9: memref<2x32x64xf32, #tpu.memory_space<vmem>>, %arg10: memref<2x1x64xf32, #tpu.memory_space<vmem>>, %arg11: memref<2x64x32xf32, #tpu.memory_space<vmem>>, %arg12: memref<2x1x32xf32, #tpu.memory_space<vmem>>, %arg13: memref<2x1x32xf32, #tpu.memory_space<vmem>>, %arg14: memref<2x1x32xf32, #tpu.memory_space<vmem>>, %arg15: memref<1x32xf32, #tpu.memory_space<vmem>>, %arg16: memref<1x32xf32, #tpu.memory_space<vmem>>, %arg17: memref<32x64xf32, #tpu.memory_space<vmem>>, %arg18: memref<1x64xf32, #tpu.memory_space<vmem>>, %arg19: memref<1x8x64xf32, #tpu.memory_space<vmem>>) attributes {dimension_semantics = [#tpu.dimension_semantics<parallel>], iteration_bounds = array<i64: 2>, scalar_prefetch = 0 : i64, scratch_operands = 0 : i64, tpu.core_type = #tpu.core_type<tc>, window_params = [{transform_indices = @transform_0, window_bounds = array<i64: 1, 8, 32>}, {transform_indices = @transform_1, window_bounds = array<i64: 1, 1, 8>}, {pipeline_mode = #tpu.pipeline_mode<synchronous>, transform_indices = @transform_2, window_bounds = array<i64: 2, 32, 96>}, {pipeline_mode = #tpu.pipeline_mode<synchronous>, transform_indices = @transform_3, window_bounds = array<i64: 2, 1, 96>}, {pipeline_mode = #tpu.pipeline_mode<synchronous>, transform_indices = @transform_4, window_bounds = array<i64: 2, 32, 32>}, {pipeline_mode = #tpu.pipeline_mode<synchronous>, transform_indices = @transform_5, window_bounds = array<i64: 2, 1, 32>}, {pipeline_mode = #tpu.pipeline_mode<synchronous>, transform_indices = @transform_6, window_bounds = array<i64: 2, 1, 32>}, {pipeline_mode = #tpu.pipeline_mode<synchronous>, transform_indices = @transform_7, window_bounds = array<i64: 2, 1, 32>}, {pipeline_mode = #tpu.pipeline_mode<synchronous>, transform_indices = @transform_8, window_bounds = array<i64: 2, 32, 64>}, {pipeline_mode = #tpu.pipeline_mode<synchronous>, transform_indices = @transform_9, window_bounds = array<i64: 2, 1, 64>}, {pipeline_mode = #tpu.pipeline_mode<synchronous>, transform_indices = @transform_10, window_bounds = array<i64: 2, 64, 32>}, {pipeline_mode = #tpu.pipeline_mode<synchronous>, transform_indices = @transform_11, window_bounds = array<i64: 2, 1, 32>}, {pipeline_mode = #tpu.pipeline_mode<synchronous>, transform_indices = @transform_12, window_bounds = array<i64: 2, 1, 32>}, {pipeline_mode = #tpu.pipeline_mode<synchronous>, transform_indices = @transform_13, window_bounds = array<i64: 2, 1, 32>}, {pipeline_mode = #tpu.pipeline_mode<synchronous>, transform_indices = @transform_14, window_bounds = array<i64: 1, 32>}, {pipeline_mode = #tpu.pipeline_mode<synchronous>, transform_indices = @transform_15, window_bounds = array<i64: 1, 32>}, {pipeline_mode = #tpu.pipeline_mode<synchronous>, transform_indices = @transform_16, window_bounds = array<i64: 32, 64>}, {pipeline_mode = #tpu.pipeline_mode<synchronous>, transform_indices = @transform_17, window_bounds = array<i64: 1, 64>}, {transform_indices = @transform_18, window_bounds = array<i64: 1, 8, 64>}]} {
    %c0 = arith.constant 0 : index
    %c0_0 = arith.constant 0 : index
    %c0_1 = arith.constant 0 : index
    %0 = vector.load %arg1[%c0, %c0_0, %c0_1] : memref<1x8x32xf32, #tpu.memory_space<vmem>>, vector<1x8x32xf32>
    %1 = vector.shape_cast %0 : vector<1x8x32xf32> to vector<8x32xf32>
    %c0_2 = arith.constant 0 : index
    %c0_3 = arith.constant 0 : index
    %2 = vector.load %arg15[%c0_2, %c0_3] : memref<1x32xf32, #tpu.memory_space<vmem>>, vector<1x32xf32>
    %c0_4 = arith.constant 0 : index
    %c0_5 = arith.constant 0 : index
    %3 = vector.load %arg16[%c0_4, %c0_5] : memref<1x32xf32, #tpu.memory_space<vmem>>, vector<1x32xf32>
    %cst = arith.constant dense<0.000000e+00> : vector<8xf32>
    %4 = vector.multi_reduction <add>, %1, %cst [1] : vector<8x32xf32> to vector<8xf32>
    %5 = vector.shape_cast %4 : vector<8xf32> to vector<8x1xf32>
    %cst_6 = arith.constant 3.200000e+01 : f32
    %6 = vector.broadcast %cst_6 : f32 to vector<8x1xf32>
    %7 = arith.divf %5, %6 : vector<8x1xf32>
    %8 = vector.broadcast %7 : vector<8x1xf32> to vector<8x32xf32>
    %9 = arith.subf %1, %8 : vector<8x32xf32>
    %10 = arith.mulf %9, %9 : vector<8x32xf32>
    %cst_7 = arith.constant dense<0.000000e+00> : vector<8xf32>
    %11 = vector.multi_reduction <add>, %10, %cst_7 [1] : vector<8x32xf32> to vector<8xf32>
    %12 = vector.shape_cast %11 : vector<8xf32> to vector<8x1xf32>
    %cst_8 = arith.constant 3.200000e+01 : f32
    %13 = vector.broadcast %cst_8 : f32 to vector<8x1xf32>
    %14 = arith.divf %12, %13 : vector<8x1xf32>
    %15 = vector.broadcast %7 : vector<8x1xf32> to vector<8x32xf32>
    %16 = arith.subf %1, %15 : vector<8x32xf32>
    %cst_9 = arith.constant 9.99999996E-13 : f32
    %17 = vector.broadcast %cst_9 : f32 to vector<8x1xf32>
    %18 = arith.addf %14, %17 : vector<8x1xf32>
    %19 = math.rsqrt %18 : vector<8x1xf32>
    %20 = vector.broadcast %19 : vector<8x1xf32> to vector<8x32xf32>
    %21 = arith.mulf %16, %20 : vector<8x32xf32>
    %22 = vector.broadcast %2 : vector<1x32xf32> to vector<8x32xf32>
    %23 = arith.mulf %21, %22 : vector<8x32xf32>
    %24 = vector.broadcast %3 : vector<1x32xf32> to vector<8x32xf32>
    %25 = arith.addf %23, %24 : vector<8x32xf32>
    %c0_10 = arith.constant 0 : index
    %c0_11 = arith.constant 0 : index
    %c0_12 = arith.constant 0 : index
    %26 = vector.load %arg2[%c0_10, %c0_11, %c0_12] : memref<1x1x8xf32, #tpu.memory_space<vmem>>, vector<1x1x8xf32>
    %27 = vector.shape_cast %26 : vector<1x1x8xf32> to vector<1x8xf32>
    %c0_13 = arith.constant 0 : index
    %c0_14 = arith.constant 0 : index
    %c0_15 = arith.constant 0 : index
    %28 = vector.load %arg3[%c0_13, %c0_14, %c0_15] : memref<2x32x96xf32, #tpu.memory_space<vmem>>, vector<1x32x96xf32>
    %29 = vector.shape_cast %28 : vector<1x32x96xf32> to vector<32x96xf32>
    %cst_16 = arith.constant dense<0.000000e+00> : vector<8x96xf32>
    %30 = tpu.matmul %25, %29, %cst_16 {dimension_numbers = #tpu.dot_dimension_numbers<[1], [0], [0], [1], [0, 0, 1, 1], [], []>} : vector<8x32xf32>, vector<32x96xf32>, vector<8x96xf32> -> vector<8x96xf32>
    %c0_17 = arith.constant 0 : index
    %c0_18 = arith.constant 0 : index
    %c0_19 = arith.constant 0 : index
    %31 = vector.load %arg4[%c0_17, %c0_18, %c0_19] : memref<2x1x96xf32, #tpu.memory_space<vmem>>, vector<1x1x96xf32>
    %32 = vector.shape_cast %31 : vector<1x1x96xf32> to vector<1x96xf32>
    %33 = vector.broadcast %32 : vector<1x96xf32> to vector<8x96xf32>
    %34 = arith.addf %30, %33 : vector<8x96xf32>
    %c0_20 = arith.constant 0 : index
    %c0_21 = arith.constant 0 : index
    %c0_22 = arith.constant 0 : index
    %35 = vector.load %arg5[%c0_20, %c0_21, %c0_22] : memref<2x32x32xf32, #tpu.memory_space<vmem>>, vector<1x32x32xf32>
    %36 = vector.shape_cast %35 : vector<1x32x32xf32> to vector<32x32xf32>
    %cst_23 = arith.constant 0.000000e+00 : f32
    %37 = vector.broadcast %cst_23 : f32 to vector<8x32xf32>
    %38 = vector.extract_strided_slice %34 {offsets = [0, 0], sizes = [8, 8], strides = [1, 1]} : vector<8x96xf32> to vector<8x8xf32>
    %39 = vector.extract_strided_slice %34 {offsets = [0, 32], sizes = [8, 8], strides = [1, 1]} : vector<8x96xf32> to vector<8x8xf32>
    %40 = vector.extract_strided_slice %34 {offsets = [0, 64], sizes = [8, 8], strides = [1, 1]} : vector<8x96xf32> to vector<8x8xf32>
    %cst_24 = arith.constant dense<0.000000e+00> : vector<8x8xf32>
    %41 = tpu.matmul %38, %39, %cst_24 {dimension_numbers = #tpu.dot_dimension_numbers<[1], [1], [0], [0], [0, 0, 1, 0], [], []>} : vector<8x8xf32>, vector<8x8xf32>, vector<8x8xf32> -> vector<8x8xf32>
    %cst_25 = arith.constant 0.353553385 : f32
    %42 = vector.broadcast %cst_25 : f32 to vector<8x8xf32>
    %43 = arith.mulf %41, %42 : vector<8x8xf32>
    %44 = vector.broadcast %27 : vector<1x8xf32> to vector<8x8xf32>
    %45 = arith.addf %43, %44 : vector<8x8xf32>
    %cst_26 = arith.constant dense<0xFF800000> : vector<8xf32>
    %46 = vector.multi_reduction <maximumf>, %45, %cst_26 [1] : vector<8x8xf32> to vector<8xf32>
    %47 = vector.shape_cast %46 : vector<8xf32> to vector<8x1xf32>
    %48 = vector.broadcast %47 : vector<8x1xf32> to vector<8x8xf32>
    %49 = arith.subf %45, %48 : vector<8x8xf32>
    %50 = math.exp %49 : vector<8x8xf32>
    %cst_27 = arith.constant dense<0.000000e+00> : vector<8xf32>
    %51 = vector.multi_reduction <add>, %50, %cst_27 [1] : vector<8x8xf32> to vector<8xf32>
    %52 = vector.shape_cast %51 : vector<8xf32> to vector<8x1xf32>
    %53 = tpu.reciprocal %52 {approx = true} : vector<8x1xf32> -> vector<8x1xf32>
    %54 = vector.broadcast %53 : vector<8x1xf32> to vector<8x8xf32>
    %55 = arith.mulf %50, %54 : vector<8x8xf32>
    %cst_28 = arith.constant dense<0.000000e+00> : vector<8x8xf32>
    %56 = tpu.matmul %55, %40, %cst_28 {dimension_numbers = #tpu.dot_dimension_numbers<[1], [0], [0], [1], [0, 0, 1, 1], [], []>} : vector<8x8xf32>, vector<8x8xf32>, vector<8x8xf32> -> vector<8x8xf32>
    %57 = vector.extract_strided_slice %36 {offsets = [0, 0], sizes = [8, 32], strides = [1, 1]} : vector<32x32xf32> to vector<8x32xf32>
    %cst_29 = arith.constant dense<0.000000e+00> : vector<8x32xf32>
    %58 = tpu.matmul %56, %57, %cst_29 {dimension_numbers = #tpu.dot_dimension_numbers<[1], [0], [0], [1], [0, 0, 1, 1], [], []>} : vector<8x8xf32>, vector<8x32xf32>, vector<8x32xf32> -> vector<8x32xf32>
    %59 = arith.addf %37, %58 : vector<8x32xf32>
    %60 = vector.extract_strided_slice %34 {offsets = [0, 8], sizes = [8, 8], strides = [1, 1]} : vector<8x96xf32> to vector<8x8xf32>
    %61 = vector.extract_strided_slice %34 {offsets = [0, 40], sizes = [8, 8], strides = [1, 1]} : vector<8x96xf32> to vector<8x8xf32>
    %62 = vector.extract_strided_slice %34 {offsets = [0, 72], sizes = [8, 8], strides = [1, 1]} : vector<8x96xf32> to vector<8x8xf32>
    %cst_30 = arith.constant dense<0.000000e+00> : vector<8x8xf32>
    %63 = tpu.matmul %60, %61, %cst_30 {dimension_numbers = #tpu.dot_dimension_numbers<[1], [1], [0], [0], [0, 0, 1, 0], [], []>} : vector<8x8xf32>, vector<8x8xf32>, vector<8x8xf32> -> vector<8x8xf32>
    %cst_31 = arith.constant 0.353553385 : f32
    %64 = vector.broadcast %cst_31 : f32 to vector<8x8xf32>
    %65 = arith.mulf %63, %64 : vector<8x8xf32>
    %66 = vector.broadcast %27 : vector<1x8xf32> to vector<8x8xf32>
    %67 = arith.addf %65, %66 : vector<8x8xf32>
    %cst_32 = arith.constant dense<0xFF800000> : vector<8xf32>
    %68 = vector.multi_reduction <maximumf>, %67, %cst_32 [1] : vector<8x8xf32> to vector<8xf32>
    %69 = vector.shape_cast %68 : vector<8xf32> to vector<8x1xf32>
    %70 = vector.broadcast %69 : vector<8x1xf32> to vector<8x8xf32>
    %71 = arith.subf %67, %70 : vector<8x8xf32>
    %72 = math.exp %71 : vector<8x8xf32>
    %cst_33 = arith.constant dense<0.000000e+00> : vector<8xf32>
    %73 = vector.multi_reduction <add>, %72, %cst_33 [1] : vector<8x8xf32> to vector<8xf32>
    %74 = vector.shape_cast %73 : vector<8xf32> to vector<8x1xf32>
    %75 = tpu.reciprocal %74 {approx = true} : vector<8x1xf32> -> vector<8x1xf32>
    %76 = vector.broadcast %75 : vector<8x1xf32> to vector<8x8xf32>
    %77 = arith.mulf %72, %76 : vector<8x8xf32>
    %cst_34 = arith.constant dense<0.000000e+00> : vector<8x8xf32>
    %78 = tpu.matmul %77, %62, %cst_34 {dimension_numbers = #tpu.dot_dimension_numbers<[1], [0], [0], [1], [0, 0, 1, 1], [], []>} : vector<8x8xf32>, vector<8x8xf32>, vector<8x8xf32> -> vector<8x8xf32>
    %79 = vector.extract_strided_slice %36 {offsets = [8, 0], sizes = [8, 32], strides = [1, 1]} : vector<32x32xf32> to vector<8x32xf32>
    %cst_35 = arith.constant dense<0.000000e+00> : vector<8x32xf32>
    %80 = tpu.matmul %78, %79, %cst_35 {dimension_numbers = #tpu.dot_dimension_numbers<[1], [0], [0], [1], [0, 0, 1, 1], [], []>} : vector<8x8xf32>, vector<8x32xf32>, vector<8x32xf32> -> vector<8x32xf32>
    %81 = arith.addf %59, %80 : vector<8x32xf32>
    %82 = vector.extract_strided_slice %34 {offsets = [0, 16], sizes = [8, 8], strides = [1, 1]} : vector<8x96xf32> to vector<8x8xf32>
    %83 = vector.extract_strided_slice %34 {offsets = [0, 48], sizes = [8, 8], strides = [1, 1]} : vector<8x96xf32> to vector<8x8xf32>
    %84 = vector.extract_strided_slice %34 {offsets = [0, 80], sizes = [8, 8], strides = [1, 1]} : vector<8x96xf32> to vector<8x8xf32>
    %cst_36 = arith.constant dense<0.000000e+00> : vector<8x8xf32>
    %85 = tpu.matmul %82, %83, %cst_36 {dimension_numbers = #tpu.dot_dimension_numbers<[1], [1], [0], [0], [0, 0, 1, 0], [], []>} : vector<8x8xf32>, vector<8x8xf32>, vector<8x8xf32> -> vector<8x8xf32>
    %cst_37 = arith.constant 0.353553385 : f32
    %86 = vector.broadcast %cst_37 : f32 to vector<8x8xf32>
    %87 = arith.mulf %85, %86 : vector<8x8xf32>
    %88 = vector.broadcast %27 : vector<1x8xf32> to vector<8x8xf32>
    %89 = arith.addf %87, %88 : vector<8x8xf32>
    %cst_38 = arith.constant dense<0xFF800000> : vector<8xf32>
    %90 = vector.multi_reduction <maximumf>, %89, %cst_38 [1] : vector<8x8xf32> to vector<8xf32>
    %91 = vector.shape_cast %90 : vector<8xf32> to vector<8x1xf32>
    %92 = vector.broadcast %91 : vector<8x1xf32> to vector<8x8xf32>
    %93 = arith.subf %89, %92 : vector<8x8xf32>
    %94 = math.exp %93 : vector<8x8xf32>
    %cst_39 = arith.constant dense<0.000000e+00> : vector<8xf32>
    %95 = vector.multi_reduction <add>, %94, %cst_39 [1] : vector<8x8xf32> to vector<8xf32>
    %96 = vector.shape_cast %95 : vector<8xf32> to vector<8x1xf32>
    %97 = tpu.reciprocal %96 {approx = true} : vector<8x1xf32> -> vector<8x1xf32>
    %98 = vector.broadcast %97 : vector<8x1xf32> to vector<8x8xf32>
    %99 = arith.mulf %94, %98 : vector<8x8xf32>
    %cst_40 = arith.constant dense<0.000000e+00> : vector<8x8xf32>
    %100 = tpu.matmul %99, %84, %cst_40 {dimension_numbers = #tpu.dot_dimension_numbers<[1], [0], [0], [1], [0, 0, 1, 1], [], []>} : vector<8x8xf32>, vector<8x8xf32>, vector<8x8xf32> -> vector<8x8xf32>
    %101 = vector.extract_strided_slice %36 {offsets = [16, 0], sizes = [8, 32], strides = [1, 1]} : vector<32x32xf32> to vector<8x32xf32>
    %cst_41 = arith.constant dense<0.000000e+00> : vector<8x32xf32>
    %102 = tpu.matmul %100, %101, %cst_41 {dimension_numbers = #tpu.dot_dimension_numbers<[1], [0], [0], [1], [0, 0, 1, 1], [], []>} : vector<8x8xf32>, vector<8x32xf32>, vector<8x32xf32> -> vector<8x32xf32>
    %103 = arith.addf %81, %102 : vector<8x32xf32>
    %104 = vector.extract_strided_slice %34 {offsets = [0, 24], sizes = [8, 8], strides = [1, 1]} : vector<8x96xf32> to vector<8x8xf32>
    %105 = vector.extract_strided_slice %34 {offsets = [0, 56], sizes = [8, 8], strides = [1, 1]} : vector<8x96xf32> to vector<8x8xf32>
    %106 = vector.extract_strided_slice %34 {offsets = [0, 88], sizes = [8, 8], strides = [1, 1]} : vector<8x96xf32> to vector<8x8xf32>
    %cst_42 = arith.constant dense<0.000000e+00> : vector<8x8xf32>
    %107 = tpu.matmul %104, %105, %cst_42 {dimension_numbers = #tpu.dot_dimension_numbers<[1], [1], [0], [0], [0, 0, 1, 0], [], []>} : vector<8x8xf32>, vector<8x8xf32>, vector<8x8xf32> -> vector<8x8xf32>
    %cst_43 = arith.constant 0.353553385 : f32
    %108 = vector.broadcast %cst_43 : f32 to vector<8x8xf32>
    %109 = arith.mulf %107, %108 : vector<8x8xf32>
    %110 = vector.broadcast %27 : vector<1x8xf32> to vector<8x8xf32>
    %111 = arith.addf %109, %110 : vector<8x8xf32>
    %cst_44 = arith.constant dense<0xFF800000> : vector<8xf32>
    %112 = vector.multi_reduction <maximumf>, %111, %cst_44 [1] : vector<8x8xf32> to vector<8xf32>
    %113 = vector.shape_cast %112 : vector<8xf32> to vector<8x1xf32>
    %114 = vector.broadcast %113 : vector<8x1xf32> to vector<8x8xf32>
    %115 = arith.subf %111, %114 : vector<8x8xf32>
    %116 = math.exp %115 : vector<8x8xf32>
    %cst_45 = arith.constant dense<0.000000e+00> : vector<8xf32>
    %117 = vector.multi_reduction <add>, %116, %cst_45 [1] : vector<8x8xf32> to vector<8xf32>
    %118 = vector.shape_cast %117 : vector<8xf32> to vector<8x1xf32>
    %119 = tpu.reciprocal %118 {approx = true} : vector<8x1xf32> -> vector<8x1xf32>
    %120 = vector.broadcast %119 : vector<8x1xf32> to vector<8x8xf32>
    %121 = arith.mulf %116, %120 : vector<8x8xf32>
    %cst_46 = arith.constant dense<0.000000e+00> : vector<8x8xf32>
    %122 = tpu.matmul %121, %106, %cst_46 {dimension_numbers = #tpu.dot_dimension_numbers<[1], [0], [0], [1], [0, 0, 1, 1], [], []>} : vector<8x8xf32>, vector<8x8xf32>, vector<8x8xf32> -> vector<8x8xf32>
    %123 = vector.extract_strided_slice %36 {offsets = [24, 0], sizes = [8, 32], strides = [1, 1]} : vector<32x32xf32> to vector<8x32xf32>
    %cst_47 = arith.constant dense<0.000000e+00> : vector<8x32xf32>
    %124 = tpu.matmul %122, %123, %cst_47 {dimension_numbers = #tpu.dot_dimension_numbers<[1], [0], [0], [1], [0, 0, 1, 1], [], []>} : vector<8x8xf32>, vector<8x32xf32>, vector<8x32xf32> -> vector<8x32xf32>
    %125 = arith.addf %103, %124 : vector<8x32xf32>
    %c0_48 = arith.constant 0 : index
    %c0_49 = arith.constant 0 : index
    %c0_50 = arith.constant 0 : index
    %126 = vector.load %arg6[%c0_48, %c0_49, %c0_50] : memref<2x1x32xf32, #tpu.memory_space<vmem>>, vector<1x1x32xf32>
    %127 = vector.shape_cast %126 : vector<1x1x32xf32> to vector<1x32xf32>
    %128 = vector.broadcast %127 : vector<1x32xf32> to vector<8x32xf32>
    %129 = arith.addf %125, %128 : vector<8x32xf32>
    %130 = arith.addf %129, %25 : vector<8x32xf32>
    %c0_51 = arith.constant 0 : index
    %c0_52 = arith.constant 0 : index
    %c0_53 = arith.constant 0 : index
    %131 = vector.load %arg7[%c0_51, %c0_52, %c0_53] : memref<2x1x32xf32, #tpu.memory_space<vmem>>, vector<1x1x32xf32>
    %132 = vector.shape_cast %131 : vector<1x1x32xf32> to vector<1x32xf32>
    %c0_54 = arith.constant 0 : index
    %c0_55 = arith.constant 0 : index
    %c0_56 = arith.constant 0 : index
    %133 = vector.load %arg8[%c0_54, %c0_55, %c0_56] : memref<2x1x32xf32, #tpu.memory_space<vmem>>, vector<1x1x32xf32>
    %134 = vector.shape_cast %133 : vector<1x1x32xf32> to vector<1x32xf32>
    %cst_57 = arith.constant dense<0.000000e+00> : vector<8xf32>
    %135 = vector.multi_reduction <add>, %130, %cst_57 [1] : vector<8x32xf32> to vector<8xf32>
    %136 = vector.shape_cast %135 : vector<8xf32> to vector<8x1xf32>
    %cst_58 = arith.constant 3.200000e+01 : f32
    %137 = vector.broadcast %cst_58 : f32 to vector<8x1xf32>
    %138 = arith.divf %136, %137 : vector<8x1xf32>
    %139 = vector.broadcast %138 : vector<8x1xf32> to vector<8x32xf32>
    %140 = arith.subf %130, %139 : vector<8x32xf32>
    %141 = arith.mulf %140, %140 : vector<8x32xf32>
    %cst_59 = arith.constant dense<0.000000e+00> : vector<8xf32>
    %142 = vector.multi_reduction <add>, %141, %cst_59 [1] : vector<8x32xf32> to vector<8xf32>
    %143 = vector.shape_cast %142 : vector<8xf32> to vector<8x1xf32>
    %cst_60 = arith.constant 3.200000e+01 : f32
    %144 = vector.broadcast %cst_60 : f32 to vector<8x1xf32>
    %145 = arith.divf %143, %144 : vector<8x1xf32>
    %146 = vector.broadcast %138 : vector<8x1xf32> to vector<8x32xf32>
    %147 = arith.subf %130, %146 : vector<8x32xf32>
    %cst_61 = arith.constant 9.99999996E-13 : f32
    %148 = vector.broadcast %cst_61 : f32 to vector<8x1xf32>
    %149 = arith.addf %145, %148 : vector<8x1xf32>
    %150 = math.rsqrt %149 : vector<8x1xf32>
    %151 = vector.broadcast %150 : vector<8x1xf32> to vector<8x32xf32>
    %152 = arith.mulf %147, %151 : vector<8x32xf32>
    %153 = vector.broadcast %132 : vector<1x32xf32> to vector<8x32xf32>
    %154 = arith.mulf %152, %153 : vector<8x32xf32>
    %155 = vector.broadcast %134 : vector<1x32xf32> to vector<8x32xf32>
    %156 = arith.addf %154, %155 : vector<8x32xf32>
    %c0_62 = arith.constant 0 : index
    %c0_63 = arith.constant 0 : index
    %c0_64 = arith.constant 0 : index
    %157 = vector.load %arg9[%c0_62, %c0_63, %c0_64] : memref<2x32x64xf32, #tpu.memory_space<vmem>>, vector<1x32x64xf32>
    %158 = vector.shape_cast %157 : vector<1x32x64xf32> to vector<32x64xf32>
    %cst_65 = arith.constant dense<0.000000e+00> : vector<8x64xf32>
    %159 = tpu.matmul %156, %158, %cst_65 {dimension_numbers = #tpu.dot_dimension_numbers<[1], [0], [0], [1], [0, 0, 1, 1], [], []>} : vector<8x32xf32>, vector<32x64xf32>, vector<8x64xf32> -> vector<8x64xf32>
    %c0_66 = arith.constant 0 : index
    %c0_67 = arith.constant 0 : index
    %c0_68 = arith.constant 0 : index
    %160 = vector.load %arg10[%c0_66, %c0_67, %c0_68] : memref<2x1x64xf32, #tpu.memory_space<vmem>>, vector<1x1x64xf32>
    %161 = vector.shape_cast %160 : vector<1x1x64xf32> to vector<1x64xf32>
    %162 = vector.broadcast %161 : vector<1x64xf32> to vector<8x64xf32>
    %163 = arith.addf %159, %162 : vector<8x64xf32>
    %cst_69 = arith.constant 5.000000e-01 : f32
    %164 = vector.broadcast %cst_69 : f32 to vector<8x64xf32>
    %165 = arith.mulf %164, %163 : vector<8x64xf32>
    %cst_70 = arith.constant 4.471500e-02 : f32
    %166 = vector.broadcast %cst_70 : f32 to vector<8x64xf32>
    %167 = arith.mulf %166, %163 : vector<8x64xf32>
    %168 = arith.mulf %167, %163 : vector<8x64xf32>
    %169 = arith.mulf %168, %163 : vector<8x64xf32>
    %170 = arith.addf %163, %169 : vector<8x64xf32>
    %cst_71 = arith.constant 0.797884583 : f32
    %171 = vector.broadcast %cst_71 : f32 to vector<8x64xf32>
    %172 = arith.mulf %171, %170 : vector<8x64xf32>
    %173 = math.tanh %172 : vector<8x64xf32>
    %cst_72 = arith.constant 1.000000e+00 : f32
    %174 = vector.broadcast %cst_72 : f32 to vector<8x64xf32>
    %175 = arith.addf %174, %173 : vector<8x64xf32>
    %176 = arith.mulf %165, %175 : vector<8x64xf32>
    %c0_73 = arith.constant 0 : index
    %c0_74 = arith.constant 0 : index
    %c0_75 = arith.constant 0 : index
    %177 = vector.load %arg11[%c0_73, %c0_74, %c0_75] : memref<2x64x32xf32, #tpu.memory_space<vmem>>, vector<1x64x32xf32>
    %178 = vector.shape_cast %177 : vector<1x64x32xf32> to vector<64x32xf32>
    %cst_76 = arith.constant dense<0.000000e+00> : vector<8x32xf32>
    %179 = tpu.matmul %176, %178, %cst_76 {dimension_numbers = #tpu.dot_dimension_numbers<[1], [0], [0], [1], [0, 0, 1, 1], [], []>} : vector<8x64xf32>, vector<64x32xf32>, vector<8x32xf32> -> vector<8x32xf32>
    %c0_77 = arith.constant 0 : index
    %c0_78 = arith.constant 0 : index
    %c0_79 = arith.constant 0 : index
    %180 = vector.load %arg12[%c0_77, %c0_78, %c0_79] : memref<2x1x32xf32, #tpu.memory_space<vmem>>, vector<1x1x32xf32>
    %181 = vector.shape_cast %180 : vector<1x1x32xf32> to vector<1x32xf32>
    %182 = vector.broadcast %181 : vector<1x32xf32> to vector<8x32xf32>
    %183 = arith.addf %179, %182 : vector<8x32xf32>
    %184 = arith.addf %183, %156 : vector<8x32xf32>
    %c0_80 = arith.constant 0 : index
    %c0_81 = arith.constant 0 : index
    %c0_82 = arith.constant 0 : index
    %185 = vector.load %arg13[%c0_80, %c0_81, %c0_82] : memref<2x1x32xf32, #tpu.memory_space<vmem>>, vector<1x1x32xf32>
    %186 = vector.shape_cast %185 : vector<1x1x32xf32> to vector<1x32xf32>
    %c0_83 = arith.constant 0 : index
    %c0_84 = arith.constant 0 : index
    %c0_85 = arith.constant 0 : index
    %187 = vector.load %arg14[%c0_83, %c0_84, %c0_85] : memref<2x1x32xf32, #tpu.memory_space<vmem>>, vector<1x1x32xf32>
    %188 = vector.shape_cast %187 : vector<1x1x32xf32> to vector<1x32xf32>
    %cst_86 = arith.constant dense<0.000000e+00> : vector<8xf32>
    %189 = vector.multi_reduction <add>, %184, %cst_86 [1] : vector<8x32xf32> to vector<8xf32>
    %190 = vector.shape_cast %189 : vector<8xf32> to vector<8x1xf32>
    %cst_87 = arith.constant 3.200000e+01 : f32
    %191 = vector.broadcast %cst_87 : f32 to vector<8x1xf32>
    %192 = arith.divf %190, %191 : vector<8x1xf32>
    %193 = vector.broadcast %192 : vector<8x1xf32> to vector<8x32xf32>
    %194 = arith.subf %184, %193 : vector<8x32xf32>
    %195 = arith.mulf %194, %194 : vector<8x32xf32>
    %cst_88 = arith.constant dense<0.000000e+00> : vector<8xf32>
    %196 = vector.multi_reduction <add>, %195, %cst_88 [1] : vector<8x32xf32> to vector<8xf32>
    %197 = vector.shape_cast %196 : vector<8xf32> to vector<8x1xf32>
    %cst_89 = arith.constant 3.200000e+01 : f32
    %198 = vector.broadcast %cst_89 : f32 to vector<8x1xf32>
    %199 = arith.divf %197, %198 : vector<8x1xf32>
    %200 = vector.broadcast %192 : vector<8x1xf32> to vector<8x32xf32>
    %201 = arith.subf %184, %200 : vector<8x32xf32>
    %cst_90 = arith.constant 9.99999996E-13 : f32
    %202 = vector.broadcast %cst_90 : f32 to vector<8x1xf32>
    %203 = arith.addf %199, %202 : vector<8x1xf32>
    %204 = math.rsqrt %203 : vector<8x1xf32>
    %205 = vector.broadcast %204 : vector<8x1xf32> to vector<8x32xf32>
    %206 = arith.mulf %201, %205 : vector<8x32xf32>
    %207 = vector.broadcast %186 : vector<1x32xf32> to vector<8x32xf32>
    %208 = arith.mulf %206, %207 : vector<8x32xf32>
    %209 = vector.broadcast %188 : vector<1x32xf32> to vector<8x32xf32>
    %210 = arith.addf %208, %209 : vector<8x32xf32>
    %c1 = arith.constant 1 : index
    %c0_91 = arith.constant 0 : index
    %c0_92 = arith.constant 0 : index
    %211 = vector.load %arg3[%c1, %c0_91, %c0_92] : memref<2x32x96xf32, #tpu.memory_space<vmem>>, vector<1x32x96xf32>
    %212 = vector.shape_cast %211 : vector<1x32x96xf32> to vector<32x96xf32>
    %cst_93 = arith.constant dense<0.000000e+00> : vector<8x96xf32>
    %213 = tpu.matmul %210, %212, %cst_93 {dimension_numbers = #tpu.dot_dimension_numbers<[1], [0], [0], [1], [0, 0, 1, 1], [], []>} : vector<8x32xf32>, vector<32x96xf32>, vector<8x96xf32> -> vector<8x96xf32>
    %c1_94 = arith.constant 1 : index
    %c0_95 = arith.constant 0 : index
    %c0_96 = arith.constant 0 : index
    %214 = vector.load %arg4[%c1_94, %c0_95, %c0_96] : memref<2x1x96xf32, #tpu.memory_space<vmem>>, vector<1x1x96xf32>
    %215 = vector.shape_cast %214 : vector<1x1x96xf32> to vector<1x96xf32>
    %216 = vector.broadcast %215 : vector<1x96xf32> to vector<8x96xf32>
    %217 = arith.addf %213, %216 : vector<8x96xf32>
    %c1_97 = arith.constant 1 : index
    %c0_98 = arith.constant 0 : index
    %c0_99 = arith.constant 0 : index
    %218 = vector.load %arg5[%c1_97, %c0_98, %c0_99] : memref<2x32x32xf32, #tpu.memory_space<vmem>>, vector<1x32x32xf32>
    %219 = vector.shape_cast %218 : vector<1x32x32xf32> to vector<32x32xf32>
    %cst_100 = arith.constant 0.000000e+00 : f32
    %220 = vector.broadcast %cst_100 : f32 to vector<8x32xf32>
    %221 = vector.extract_strided_slice %217 {offsets = [0, 0], sizes = [8, 8], strides = [1, 1]} : vector<8x96xf32> to vector<8x8xf32>
    %222 = vector.extract_strided_slice %217 {offsets = [0, 32], sizes = [8, 8], strides = [1, 1]} : vector<8x96xf32> to vector<8x8xf32>
    %223 = vector.extract_strided_slice %217 {offsets = [0, 64], sizes = [8, 8], strides = [1, 1]} : vector<8x96xf32> to vector<8x8xf32>
    %cst_101 = arith.constant dense<0.000000e+00> : vector<8x8xf32>
    %224 = tpu.matmul %221, %222, %cst_101 {dimension_numbers = #tpu.dot_dimension_numbers<[1], [1], [0], [0], [0, 0, 1, 0], [], []>} : vector<8x8xf32>, vector<8x8xf32>, vector<8x8xf32> -> vector<8x8xf32>
    %cst_102 = arith.constant 0.353553385 : f32
    %225 = vector.broadcast %cst_102 : f32 to vector<8x8xf32>
    %226 = arith.mulf %224, %225 : vector<8x8xf32>
    %227 = vector.broadcast %27 : vector<1x8xf32> to vector<8x8xf32>
    %228 = arith.addf %226, %227 : vector<8x8xf32>
    %cst_103 = arith.constant dense<0xFF800000> : vector<8xf32>
    %229 = vector.multi_reduction <maximumf>, %228, %cst_103 [1] : vector<8x8xf32> to vector<8xf32>
    %230 = vector.shape_cast %229 : vector<8xf32> to vector<8x1xf32>
    %231 = vector.broadcast %230 : vector<8x1xf32> to vector<8x8xf32>
    %232 = arith.subf %228, %231 : vector<8x8xf32>
    %233 = math.exp %232 : vector<8x8xf32>
    %cst_104 = arith.constant dense<0.000000e+00> : vector<8xf32>
    %234 = vector.multi_reduction <add>, %233, %cst_104 [1] : vector<8x8xf32> to vector<8xf32>
    %235 = vector.shape_cast %234 : vector<8xf32> to vector<8x1xf32>
    %236 = tpu.reciprocal %235 {approx = true} : vector<8x1xf32> -> vector<8x1xf32>
    %237 = vector.broadcast %236 : vector<8x1xf32> to vector<8x8xf32>
    %238 = arith.mulf %233, %237 : vector<8x8xf32>
    %cst_105 = arith.constant dense<0.000000e+00> : vector<8x8xf32>
    %239 = tpu.matmul %238, %223, %cst_105 {dimension_numbers = #tpu.dot_dimension_numbers<[1], [0], [0], [1], [0, 0, 1, 1], [], []>} : vector<8x8xf32>, vector<8x8xf32>, vector<8x8xf32> -> vector<8x8xf32>
    %240 = vector.extract_strided_slice %219 {offsets = [0, 0], sizes = [8, 32], strides = [1, 1]} : vector<32x32xf32> to vector<8x32xf32>
    %cst_106 = arith.constant dense<0.000000e+00> : vector<8x32xf32>
    %241 = tpu.matmul %239, %240, %cst_106 {dimension_numbers = #tpu.dot_dimension_numbers<[1], [0], [0], [1], [0, 0, 1, 1], [], []>} : vector<8x8xf32>, vector<8x32xf32>, vector<8x32xf32> -> vector<8x32xf32>
    %242 = arith.addf %220, %241 : vector<8x32xf32>
    %243 = vector.extract_strided_slice %217 {offsets = [0, 8], sizes = [8, 8], strides = [1, 1]} : vector<8x96xf32> to vector<8x8xf32>
    %244 = vector.extract_strided_slice %217 {offsets = [0, 40], sizes = [8, 8], strides = [1, 1]} : vector<8x96xf32> to vector<8x8xf32>
    %245 = vector.extract_strided_slice %217 {offsets = [0, 72], sizes = [8, 8], strides = [1, 1]} : vector<8x96xf32> to vector<8x8xf32>
    %cst_107 = arith.constant dense<0.000000e+00> : vector<8x8xf32>
    %246 = tpu.matmul %243, %244, %cst_107 {dimension_numbers = #tpu.dot_dimension_numbers<[1], [1], [0], [0], [0, 0, 1, 0], [], []>} : vector<8x8xf32>, vector<8x8xf32>, vector<8x8xf32> -> vector<8x8xf32>
    %cst_108 = arith.constant 0.353553385 : f32
    %247 = vector.broadcast %cst_108 : f32 to vector<8x8xf32>
    %248 = arith.mulf %246, %247 : vector<8x8xf32>
    %249 = vector.broadcast %27 : vector<1x8xf32> to vector<8x8xf32>
    %250 = arith.addf %248, %249 : vector<8x8xf32>
    %cst_109 = arith.constant dense<0xFF800000> : vector<8xf32>
    %251 = vector.multi_reduction <maximumf>, %250, %cst_109 [1] : vector<8x8xf32> to vector<8xf32>
    %252 = vector.shape_cast %251 : vector<8xf32> to vector<8x1xf32>
    %253 = vector.broadcast %252 : vector<8x1xf32> to vector<8x8xf32>
    %254 = arith.subf %250, %253 : vector<8x8xf32>
    %255 = math.exp %254 : vector<8x8xf32>
    %cst_110 = arith.constant dense<0.000000e+00> : vector<8xf32>
    %256 = vector.multi_reduction <add>, %255, %cst_110 [1] : vector<8x8xf32> to vector<8xf32>
    %257 = vector.shape_cast %256 : vector<8xf32> to vector<8x1xf32>
    %258 = tpu.reciprocal %257 {approx = true} : vector<8x1xf32> -> vector<8x1xf32>
    %259 = vector.broadcast %258 : vector<8x1xf32> to vector<8x8xf32>
    %260 = arith.mulf %255, %259 : vector<8x8xf32>
    %cst_111 = arith.constant dense<0.000000e+00> : vector<8x8xf32>
    %261 = tpu.matmul %260, %245, %cst_111 {dimension_numbers = #tpu.dot_dimension_numbers<[1], [0], [0], [1], [0, 0, 1, 1], [], []>} : vector<8x8xf32>, vector<8x8xf32>, vector<8x8xf32> -> vector<8x8xf32>
    %262 = vector.extract_strided_slice %219 {offsets = [8, 0], sizes = [8, 32], strides = [1, 1]} : vector<32x32xf32> to vector<8x32xf32>
    %cst_112 = arith.constant dense<0.000000e+00> : vector<8x32xf32>
    %263 = tpu.matmul %261, %262, %cst_112 {dimension_numbers = #tpu.dot_dimension_numbers<[1], [0], [0], [1], [0, 0, 1, 1], [], []>} : vector<8x8xf32>, vector<8x32xf32>, vector<8x32xf32> -> vector<8x32xf32>
    %264 = arith.addf %242, %263 : vector<8x32xf32>
    %265 = vector.extract_strided_slice %217 {offsets = [0, 16], sizes = [8, 8], strides = [1, 1]} : vector<8x96xf32> to vector<8x8xf32>
    %266 = vector.extract_strided_slice %217 {offsets = [0, 48], sizes = [8, 8], strides = [1, 1]} : vector<8x96xf32> to vector<8x8xf32>
    %267 = vector.extract_strided_slice %217 {offsets = [0, 80], sizes = [8, 8], strides = [1, 1]} : vector<8x96xf32> to vector<8x8xf32>
    %cst_113 = arith.constant dense<0.000000e+00> : vector<8x8xf32>
    %268 = tpu.matmul %265, %266, %cst_113 {dimension_numbers = #tpu.dot_dimension_numbers<[1], [1], [0], [0], [0, 0, 1, 0], [], []>} : vector<8x8xf32>, vector<8x8xf32>, vector<8x8xf32> -> vector<8x8xf32>
    %cst_114 = arith.constant 0.353553385 : f32
    %269 = vector.broadcast %cst_114 : f32 to vector<8x8xf32>
    %270 = arith.mulf %268, %269 : vector<8x8xf32>
    %271 = vector.broadcast %27 : vector<1x8xf32> to vector<8x8xf32>
    %272 = arith.addf %270, %271 : vector<8x8xf32>
    %cst_115 = arith.constant dense<0xFF800000> : vector<8xf32>
    %273 = vector.multi_reduction <maximumf>, %272, %cst_115 [1] : vector<8x8xf32> to vector<8xf32>
    %274 = vector.shape_cast %273 : vector<8xf32> to vector<8x1xf32>
    %275 = vector.broadcast %274 : vector<8x1xf32> to vector<8x8xf32>
    %276 = arith.subf %272, %275 : vector<8x8xf32>
    %277 = math.exp %276 : vector<8x8xf32>
    %cst_116 = arith.constant dense<0.000000e+00> : vector<8xf32>
    %278 = vector.multi_reduction <add>, %277, %cst_116 [1] : vector<8x8xf32> to vector<8xf32>
    %279 = vector.shape_cast %278 : vector<8xf32> to vector<8x1xf32>
    %280 = tpu.reciprocal %279 {approx = true} : vector<8x1xf32> -> vector<8x1xf32>
    %281 = vector.broadcast %280 : vector<8x1xf32> to vector<8x8xf32>
    %282 = arith.mulf %277, %281 : vector<8x8xf32>
    %cst_117 = arith.constant dense<0.000000e+00> : vector<8x8xf32>
    %283 = tpu.matmul %282, %267, %cst_117 {dimension_numbers = #tpu.dot_dimension_numbers<[1], [0], [0], [1], [0, 0, 1, 1], [], []>} : vector<8x8xf32>, vector<8x8xf32>, vector<8x8xf32> -> vector<8x8xf32>
    %284 = vector.extract_strided_slice %219 {offsets = [16, 0], sizes = [8, 32], strides = [1, 1]} : vector<32x32xf32> to vector<8x32xf32>
    %cst_118 = arith.constant dense<0.000000e+00> : vector<8x32xf32>
    %285 = tpu.matmul %283, %284, %cst_118 {dimension_numbers = #tpu.dot_dimension_numbers<[1], [0], [0], [1], [0, 0, 1, 1], [], []>} : vector<8x8xf32>, vector<8x32xf32>, vector<8x32xf32> -> vector<8x32xf32>
    %286 = arith.addf %264, %285 : vector<8x32xf32>
    %287 = vector.extract_strided_slice %217 {offsets = [0, 24], sizes = [8, 8], strides = [1, 1]} : vector<8x96xf32> to vector<8x8xf32>
    %288 = vector.extract_strided_slice %217 {offsets = [0, 56], sizes = [8, 8], strides = [1, 1]} : vector<8x96xf32> to vector<8x8xf32>
    %289 = vector.extract_strided_slice %217 {offsets = [0, 88], sizes = [8, 8], strides = [1, 1]} : vector<8x96xf32> to vector<8x8xf32>
    %cst_119 = arith.constant dense<0.000000e+00> : vector<8x8xf32>
    %290 = tpu.matmul %287, %288, %cst_119 {dimension_numbers = #tpu.dot_dimension_numbers<[1], [1], [0], [0], [0, 0, 1, 0], [], []>} : vector<8x8xf32>, vector<8x8xf32>, vector<8x8xf32> -> vector<8x8xf32>
    %cst_120 = arith.constant 0.353553385 : f32
    %291 = vector.broadcast %cst_120 : f32 to vector<8x8xf32>
    %292 = arith.mulf %290, %291 : vector<8x8xf32>
    %293 = vector.broadcast %27 : vector<1x8xf32> to vector<8x8xf32>
    %294 = arith.addf %292, %293 : vector<8x8xf32>
    %cst_121 = arith.constant dense<0xFF800000> : vector<8xf32>
    %295 = vector.multi_reduction <maximumf>, %294, %cst_121 [1] : vector<8x8xf32> to vector<8xf32>
    %296 = vector.shape_cast %295 : vector<8xf32> to vector<8x1xf32>
    %297 = vector.broadcast %296 : vector<8x1xf32> to vector<8x8xf32>
    %298 = arith.subf %294, %297 : vector<8x8xf32>
    %299 = math.exp %298 : vector<8x8xf32>
    %cst_122 = arith.constant dense<0.000000e+00> : vector<8xf32>
    %300 = vector.multi_reduction <add>, %299, %cst_122 [1] : vector<8x8xf32> to vector<8xf32>
    %301 = vector.shape_cast %300 : vector<8xf32> to vector<8x1xf32>
    %302 = tpu.reciprocal %301 {approx = true} : vector<8x1xf32> -> vector<8x1xf32>
    %303 = vector.broadcast %302 : vector<8x1xf32> to vector<8x8xf32>
    %304 = arith.mulf %299, %303 : vector<8x8xf32>
    %cst_123 = arith.constant dense<0.000000e+00> : vector<8x8xf32>
    %305 = tpu.matmul %304, %289, %cst_123 {dimension_numbers = #tpu.dot_dimension_numbers<[1], [0], [0], [1], [0, 0, 1, 1], [], []>} : vector<8x8xf32>, vector<8x8xf32>, vector<8x8xf32> -> vector<8x8xf32>
    %306 = vector.extract_strided_slice %219 {offsets = [24, 0], sizes = [8, 32], strides = [1, 1]} : vector<32x32xf32> to vector<8x32xf32>
    %cst_124 = arith.constant dense<0.000000e+00> : vector<8x32xf32>
    %307 = tpu.matmul %305, %306, %cst_124 {dimension_numbers = #tpu.dot_dimension_numbers<[1], [0], [0], [1], [0, 0, 1, 1], [], []>} : vector<8x8xf32>, vector<8x32xf32>, vector<8x32xf32> -> vector<8x32xf32>
    %308 = arith.addf %286, %307 : vector<8x32xf32>
    %c1_125 = arith.constant 1 : index
    %c0_126 = arith.constant 0 : index
    %c0_127 = arith.constant 0 : index
    %309 = vector.load %arg6[%c1_125, %c0_126, %c0_127] : memref<2x1x32xf32, #tpu.memory_space<vmem>>, vector<1x1x32xf32>
    %310 = vector.shape_cast %309 : vector<1x1x32xf32> to vector<1x32xf32>
    %311 = vector.broadcast %310 : vector<1x32xf32> to vector<8x32xf32>
    %312 = arith.addf %308, %311 : vector<8x32xf32>
    %313 = arith.addf %312, %210 : vector<8x32xf32>
    %c1_128 = arith.constant 1 : index
    %c0_129 = arith.constant 0 : index
    %c0_130 = arith.constant 0 : index
    %314 = vector.load %arg7[%c1_128, %c0_129, %c0_130] : memref<2x1x32xf32, #tpu.memory_space<vmem>>, vector<1x1x32xf32>
    %315 = vector.shape_cast %314 : vector<1x1x32xf32> to vector<1x32xf32>
    %c1_131 = arith.constant 1 : index
    %c0_132 = arith.constant 0 : index
    %c0_133 = arith.constant 0 : index
    %316 = vector.load %arg8[%c1_131, %c0_132, %c0_133] : memref<2x1x32xf32, #tpu.memory_space<vmem>>, vector<1x1x32xf32>
    %317 = vector.shape_cast %316 : vector<1x1x32xf32> to vector<1x32xf32>
    %cst_134 = arith.constant dense<0.000000e+00> : vector<8xf32>
    %318 = vector.multi_reduction <add>, %313, %cst_134 [1] : vector<8x32xf32> to vector<8xf32>
    %319 = vector.shape_cast %318 : vector<8xf32> to vector<8x1xf32>
    %cst_135 = arith.constant 3.200000e+01 : f32
    %320 = vector.broadcast %cst_135 : f32 to vector<8x1xf32>
    %321 = arith.divf %319, %320 : vector<8x1xf32>
    %322 = vector.broadcast %321 : vector<8x1xf32> to vector<8x32xf32>
    %323 = arith.subf %313, %322 : vector<8x32xf32>
    %324 = arith.mulf %323, %323 : vector<8x32xf32>
    %cst_136 = arith.constant dense<0.000000e+00> : vector<8xf32>
    %325 = vector.multi_reduction <add>, %324, %cst_136 [1] : vector<8x32xf32> to vector<8xf32>
    %326 = vector.shape_cast %325 : vector<8xf32> to vector<8x1xf32>
    %cst_137 = arith.constant 3.200000e+01 : f32
    %327 = vector.broadcast %cst_137 : f32 to vector<8x1xf32>
    %328 = arith.divf %326, %327 : vector<8x1xf32>
    %329 = vector.broadcast %321 : vector<8x1xf32> to vector<8x32xf32>
    %330 = arith.subf %313, %329 : vector<8x32xf32>
    %cst_138 = arith.constant 9.99999996E-13 : f32
    %331 = vector.broadcast %cst_138 : f32 to vector<8x1xf32>
    %332 = arith.addf %328, %331 : vector<8x1xf32>
    %333 = math.rsqrt %332 : vector<8x1xf32>
    %334 = vector.broadcast %333 : vector<8x1xf32> to vector<8x32xf32>
    %335 = arith.mulf %330, %334 : vector<8x32xf32>
    %336 = vector.broadcast %315 : vector<1x32xf32> to vector<8x32xf32>
    %337 = arith.mulf %335, %336 : vector<8x32xf32>
    %338 = vector.broadcast %317 : vector<1x32xf32> to vector<8x32xf32>
    %339 = arith.addf %337, %338 : vector<8x32xf32>
    %c1_139 = arith.constant 1 : index
    %c0_140 = arith.constant 0 : index
    %c0_141 = arith.constant 0 : index
    %340 = vector.load %arg9[%c1_139, %c0_140, %c0_141] : memref<2x32x64xf32, #tpu.memory_space<vmem>>, vector<1x32x64xf32>
    %341 = vector.shape_cast %340 : vector<1x32x64xf32> to vector<32x64xf32>
    %cst_142 = arith.constant dense<0.000000e+00> : vector<8x64xf32>
    %342 = tpu.matmul %339, %341, %cst_142 {dimension_numbers = #tpu.dot_dimension_numbers<[1], [0], [0], [1], [0, 0, 1, 1], [], []>} : vector<8x32xf32>, vector<32x64xf32>, vector<8x64xf32> -> vector<8x64xf32>
    %c1_143 = arith.constant 1 : index
    %c0_144 = arith.constant 0 : index
    %c0_145 = arith.constant 0 : index
    %343 = vector.load %arg10[%c1_143, %c0_144, %c0_145] : memref<2x1x64xf32, #tpu.memory_space<vmem>>, vector<1x1x64xf32>
    %344 = vector.shape_cast %343 : vector<1x1x64xf32> to vector<1x64xf32>
    %345 = vector.broadcast %344 : vector<1x64xf32> to vector<8x64xf32>
    %346 = arith.addf %342, %345 : vector<8x64xf32>
    %cst_146 = arith.constant 5.000000e-01 : f32
    %347 = vector.broadcast %cst_146 : f32 to vector<8x64xf32>
    %348 = arith.mulf %347, %346 : vector<8x64xf32>
    %cst_147 = arith.constant 4.471500e-02 : f32
    %349 = vector.broadcast %cst_147 : f32 to vector<8x64xf32>
    %350 = arith.mulf %349, %346 : vector<8x64xf32>
    %351 = arith.mulf %350, %346 : vector<8x64xf32>
    %352 = arith.mulf %351, %346 : vector<8x64xf32>
    %353 = arith.addf %346, %352 : vector<8x64xf32>
    %cst_148 = arith.constant 0.797884583 : f32
    %354 = vector.broadcast %cst_148 : f32 to vector<8x64xf32>
    %355 = arith.mulf %354, %353 : vector<8x64xf32>
    %356 = math.tanh %355 : vector<8x64xf32>
    %cst_149 = arith.constant 1.000000e+00 : f32
    %357 = vector.broadcast %cst_149 : f32 to vector<8x64xf32>
    %358 = arith.addf %357, %356 : vector<8x64xf32>
    %359 = arith.mulf %348, %358 : vector<8x64xf32>
    %c1_150 = arith.constant 1 : index
    %c0_151 = arith.constant 0 : index
    %c0_152 = arith.constant 0 : index
    %360 = vector.load %arg11[%c1_150, %c0_151, %c0_152] : memref<2x64x32xf32, #tpu.memory_space<vmem>>, vector<1x64x32xf32>
    %361 = vector.shape_cast %360 : vector<1x64x32xf32> to vector<64x32xf32>
    %cst_153 = arith.constant dense<0.000000e+00> : vector<8x32xf32>
    %362 = tpu.matmul %359, %361, %cst_153 {dimension_numbers = #tpu.dot_dimension_numbers<[1], [0], [0], [1], [0, 0, 1, 1], [], []>} : vector<8x64xf32>, vector<64x32xf32>, vector<8x32xf32> -> vector<8x32xf32>
    %c1_154 = arith.constant 1 : index
    %c0_155 = arith.constant 0 : index
    %c0_156 = arith.constant 0 : index
    %363 = vector.load %arg12[%c1_154, %c0_155, %c0_156] : memref<2x1x32xf32, #tpu.memory_space<vmem>>, vector<1x1x32xf32>
    %364 = vector.shape_cast %363 : vector<1x1x32xf32> to vector<1x32xf32>
    %365 = vector.broadcast %364 : vector<1x32xf32> to vector<8x32xf32>
    %366 = arith.addf %362, %365 : vector<8x32xf32>
    %367 = arith.addf %366, %339 : vector<8x32xf32>
    %c1_157 = arith.constant 1 : index
    %c0_158 = arith.constant 0 : index
    %c0_159 = arith.constant 0 : index
    %368 = vector.load %arg13[%c1_157, %c0_158, %c0_159] : memref<2x1x32xf32, #tpu.memory_space<vmem>>, vector<1x1x32xf32>
    %369 = vector.shape_cast %368 : vector<1x1x32xf32> to vector<1x32xf32>
    %c1_160 = arith.constant 1 : index
    %c0_161 = arith.constant 0 : index
    %c0_162 = arith.constant 0 : index
    %370 = vector.load %arg14[%c1_160, %c0_161, %c0_162] : memref<2x1x32xf32, #tpu.memory_space<vmem>>, vector<1x1x32xf32>
    %371 = vector.shape_cast %370 : vector<1x1x32xf32> to vector<1x32xf32>
    %cst_163 = arith.constant dense<0.000000e+00> : vector<8xf32>
    %372 = vector.multi_reduction <add>, %367, %cst_163 [1] : vector<8x32xf32> to vector<8xf32>
    %373 = vector.shape_cast %372 : vector<8xf32> to vector<8x1xf32>
    %cst_164 = arith.constant 3.200000e+01 : f32
    %374 = vector.broadcast %cst_164 : f32 to vector<8x1xf32>
    %375 = arith.divf %373, %374 : vector<8x1xf32>
    %376 = vector.broadcast %375 : vector<8x1xf32> to vector<8x32xf32>
    %377 = arith.subf %367, %376 : vector<8x32xf32>
    %378 = arith.mulf %377, %377 : vector<8x32xf32>
    %cst_165 = arith.constant dense<0.000000e+00> : vector<8xf32>
    %379 = vector.multi_reduction <add>, %378, %cst_165 [1] : vector<8x32xf32> to vector<8xf32>
    %380 = vector.shape_cast %379 : vector<8xf32> to vector<8x1xf32>
    %cst_166 = arith.constant 3.200000e+01 : f32
    %381 = vector.broadcast %cst_166 : f32 to vector<8x1xf32>
    %382 = arith.divf %380, %381 : vector<8x1xf32>
    %383 = vector.broadcast %375 : vector<8x1xf32> to vector<8x32xf32>
    %384 = arith.subf %367, %383 : vector<8x32xf32>
    %cst_167 = arith.constant 9.99999996E-13 : f32
    %385 = vector.broadcast %cst_167 : f32 to vector<8x1xf32>
    %386 = arith.addf %382, %385 : vector<8x1xf32>
    %387 = math.rsqrt %386 : vector<8x1xf32>
    %388 = vector.broadcast %387 : vector<8x1xf32> to vector<8x32xf32>
    %389 = arith.mulf %384, %388 : vector<8x32xf32>
    %390 = vector.broadcast %369 : vector<1x32xf32> to vector<8x32xf32>
    %391 = arith.mulf %389, %390 : vector<8x32xf32>
    %392 = vector.broadcast %371 : vector<1x32xf32> to vector<8x32xf32>
    %393 = arith.addf %391, %392 : vector<8x32xf32>
    %c0_168 = arith.constant 0 : index
    %c0_169 = arith.constant 0 : index
    %394 = vector.load %arg17[%c0_168, %c0_169] : memref<32x64xf32, #tpu.memory_space<vmem>>, vector<32x64xf32>
    %cst_170 = arith.constant dense<0.000000e+00> : vector<8x64xf32>
    %395 = tpu.matmul %393, %394, %cst_170 {dimension_numbers = #tpu.dot_dimension_numbers<[1], [0], [0], [1], [0, 0, 1, 1], [], []>} : vector<8x32xf32>, vector<32x64xf32>, vector<8x64xf32> -> vector<8x64xf32>
    %c0_171 = arith.constant 0 : index
    %c0_172 = arith.constant 0 : index
    %396 = vector.load %arg18[%c0_171, %c0_172] : memref<1x64xf32, #tpu.memory_space<vmem>>, vector<1x64xf32>
    %397 = vector.broadcast %396 : vector<1x64xf32> to vector<8x64xf32>
    %398 = arith.addf %395, %397 : vector<8x64xf32>
    %cst_173 = arith.constant dense<0xFF800000> : vector<8xf32>
    %399 = vector.multi_reduction <maximumf>, %398, %cst_173 [1] : vector<8x64xf32> to vector<8xf32>
    %400 = vector.shape_cast %399 : vector<8xf32> to vector<8x1xf32>
    %401 = vector.broadcast %400 : vector<8x1xf32> to vector<8x64xf32>
    %402 = arith.subf %398, %401 : vector<8x64xf32>
    %403 = math.exp %402 : vector<8x64xf32>
    %cst_174 = arith.constant dense<0.000000e+00> : vector<8xf32>
    %404 = vector.multi_reduction <add>, %403, %cst_174 [1] : vector<8x64xf32> to vector<8xf32>
    %405 = vector.shape_cast %404 : vector<8xf32> to vector<8x1xf32>
    %406 = tpu.reciprocal %405 {approx = true} : vector<8x1xf32> -> vector<8x1xf32>
    %407 = vector.broadcast %406 : vector<8x1xf32> to vector<8x64xf32>
    %408 = arith.mulf %403, %407 : vector<8x64xf32>
    %c0_175 = arith.constant 0 : index
    %c0_176 = arith.constant 0 : index
    %c0_177 = arith.constant 0 : index
    %409 = vector.load %arg19[%c0_175, %c0_176, %c0_177] : memref<1x8x64xf32, #tpu.memory_space<vmem>>, vector<1x8x64xf32>
    %410 = vector.shape_cast %409 : vector<1x8x64xf32> to vector<8x64xf32>
    %411 = vector.shape_cast %408 : vector<8x64xf32> to vector<1x8x64xf32>
    tpu.vector_store %arg19[%c0_175, %c0_176, %c0_177], %411 {strides = array<i32>} : memref<1x8x64xf32, #tpu.memory_space<vmem>>, vector<1x8x64xf32>,
    return
  }
  func.func @transform_0(%arg0: i32) -> (i32, i32, i32) {
    %c0_i32 = arith.constant 0 : i32
    %c0_i32_0 = arith.constant 0 : i32
    %c0_i32_1 = arith.constant 0 : i32
    return %arg0, %c0_i32, %c0_i32_0 : i32, i32, i32
  }
  func.func @transform_1(%arg0: i32) -> (i32, i32, i32) {
    %c0_i32 = arith.constant 0 : i32
    %c0_i32_0 = arith.constant 0 : i32
    %c0_i32_1 = arith.constant 0 : i32
    return %arg0, %c0_i32, %c0_i32_0 : i32, i32, i32
  }
  func.func @transform_2(%arg0: i32) -> (i32, i32, i32) {
    %c0_i32 = arith.constant 0 : i32
    %c0_i32_0 = arith.constant 0 : i32
    %c0_i32_1 = arith.constant 0 : i32
    %c0_i32_2 = arith.constant 0 : i32
    return %c0_i32, %c0_i32_0, %c0_i32_1 : i32, i32, i32
  }
  func.func @transform_3(%arg0: i32) -> (i32, i32, i32) {
    %c0_i32 = arith.constant 0 : i32
    %c0_i32_0 = arith.constant 0 : i32
    %c0_i32_1 = arith.constant 0 : i32
    %c0_i32_2 = arith.constant 0 : i32
    return %c0_i32, %c0_i32_0, %c0_i32_1 : i32, i32, i32
  }
  func.func @transform_4(%arg0: i32) -> (i32, i32, i32) {
    %c0_i32 = arith.constant 0 : i32
    %c0_i32_0 = arith.constant 0 : i32
    %c0_i32_1 = arith.constant 0 : i32
    %c0_i32_2 = arith.constant 0 : i32
    return %c0_i32, %c0_i32_0, %c0_i32_1 : i32, i32, i32
  }
  func.func @transform_5(%arg0: i32) -> (i32, i32, i32) {
    %c0_i32 = arith.constant 0 : i32
    %c0_i32_0 = arith.constant 0 : i32
    %c0_i32_1 = arith.constant 0 : i32
    %c0_i32_2 = arith.constant 0 : i32
    return %c0_i32, %c0_i32_0, %c0_i32_1 : i32, i32, i32
  }
  func.func @transform_6(%arg0: i32) -> (i32, i32, i32) {
    %c0_i32 = arith.constant 0 : i32
    %c0_i32_0 = arith.constant 0 : i32
    %c0_i32_1 = arith.constant 0 : i32
    %c0_i32_2 = arith.constant 0 : i32
    return %c0_i32, %c0_i32_0, %c0_i32_1 : i32, i32, i32
  }
  func.func @transform_7(%arg0: i32) -> (i32, i32, i32) {
    %c0_i32 = arith.constant 0 : i32
    %c0_i32_0 = arith.constant 0 : i32
    %c0_i32_1 = arith.constant 0 : i32
    %c0_i32_2 = arith.constant 0 : i32
    return %c0_i32, %c0_i32_0, %c0_i32_1 : i32, i32, i32
  }
  func.func @transform_8(%arg0: i32) -> (i32, i32, i32) {
    %c0_i32 = arith.constant 0 : i32
    %c0_i32_0 = arith.constant 0 : i32
    %c0_i32_1 = arith.constant 0 : i32
    %c0_i32_2 = arith.constant 0 : i32
    return %c0_i32, %c0_i32_0, %c0_i32_1 : i32, i32, i32
  }
  func.func @transform_9(%arg0: i32) -> (i32, i32, i32) {
    %c0_i32 = arith.constant 0 : i32
    %c0_i32_0 = arith.constant 0 : i32
    %c0_i32_1 = arith.constant 0 : i32
    %c0_i32_2 = arith.constant 0 : i32
    return %c0_i32, %c0_i32_0, %c0_i32_1 : i32, i32, i32
  }
  func.func @transform_10(%arg0: i32) -> (i32, i32, i32) {
    %c0_i32 = arith.constant 0 : i32
    %c0_i32_0 = arith.constant 0 : i32
    %c0_i32_1 = arith.constant 0 : i32
    %c0_i32_2 = arith.constant 0 : i32
    return %c0_i32, %c0_i32_0, %c0_i32_1 : i32, i32, i32
  }
  func.func @transform_11(%arg0: i32) -> (i32, i32, i32) {
    %c0_i32 = arith.constant 0 : i32
    %c0_i32_0 = arith.constant 0 : i32
    %c0_i32_1 = arith.constant 0 : i32
    %c0_i32_2 = arith.constant 0 : i32
    return %c0_i32, %c0_i32_0, %c0_i32_1 : i32, i32, i32
  }
  func.func @transform_12(%arg0: i32) -> (i32, i32, i32) {
    %c0_i32 = arith.constant 0 : i32
    %c0_i32_0 = arith.constant 0 : i32
    %c0_i32_1 = arith.constant 0 : i32
    %c0_i32_2 = arith.constant 0 : i32
    return %c0_i32, %c0_i32_0, %c0_i32_1 : i32, i32, i32
  }
  func.func @transform_13(%arg0: i32) -> (i32, i32, i32) {
    %c0_i32 = arith.constant 0 : i32
    %c0_i32_0 = arith.constant 0 : i32
    %c0_i32_1 = arith.constant 0 : i32
    %c0_i32_2 = arith.constant 0 : i32
    return %c0_i32, %c0_i32_0, %c0_i32_1 : i32, i32, i32
  }
  func.func @transform_14(%arg0: i32) -> (i32, i32) {
    %c0_i32 = arith.constant 0 : i32
    %c0_i32_0 = arith.constant 0 : i32
    %c0_i32_1 = arith.constant 0 : i32
    return %c0_i32, %c0_i32_0 : i32, i32
  }
  func.func @transform_15(%arg0: i32) -> (i32, i32) {
    %c0_i32 = arith.constant 0 : i32
    %c0_i32_0 = arith.constant 0 : i32
    %c0_i32_1 = arith.constant 0 : i32
    return %c0_i32, %c0_i32_0 : i32, i32
  }
  func.func @transform_16(%arg0: i32) -> (i32, i32) {
    %c0_i32 = arith.constant 0 : i32
    %c0_i32_0 = arith.constant 0 : i32
    %c0_i32_1 = arith.constant 0 : i32
    return %c0_i32, %c0_i32_0 : i32, i32
  }
  func.func @transform_17(%arg0: i32) -> (i32, i32) {
    %c0_i32 = arith.constant 0 : i32
    %c0_i32_0 = arith.constant 0 : i32
    %c0_i32_1 = arith.constant 0 : i32
    return %c0_i32, %c0_i32_0 : i32, i32
  }
  func.func @transform_18(%arg0: i32) -> (i32, i32, i32) {
    %c0_i32 = arith.constant 0 : i32
    %c0_i32_0 = arith.constant 0 : i32
    %c0_i32_1 = arith.constant 0 : i32
    return %arg0, %c0_i32, %c0_i32_0 : i32, i32, i32
  }
}

</mosaic_0001>

<llo_original>
// kernel: _lambda_.1
$region0: #{_lambda_.1}
  #allocation0 [shape = 'u32[]', space=smem, size = 0x4, offset = 0x4, fixed_abs, tag = 'smem constant byte address 0x4 - core index']
  #allocation1 [shape = 'u32[72,128]{1,0:T(1,128)}', space=vmem, size = 0x9000, scoped, tag = 'internal scratch']
  %s0 = inlined_call_operand.vmem [shape: f32[2,8,32], index: 0, kind: input, shape index: {}]
  %s1 = inlined_call_operand.vmem [shape: f32[2,1,8], index: 1, kind: input, shape index: {}]
  %s2 = inlined_call_operand.vmem [shape: f32[2,32,96], index: 2, kind: input, shape index: {}]
  %s3 = inlined_call_operand.vmem [shape: f32[2,1,96], index: 3, kind: input, shape index: {}]
  %s4 = inlined_call_operand.vmem [shape: f32[2,32,32], index: 4, kind: input, shape index: {}]
  %s5 = inlined_call_operand.vmem [shape: f32[2,1,32], index: 5, kind: input, shape index: {}]
  %s6 = inlined_call_operand.vmem [shape: f32[2,1,32], index: 6, kind: input, shape index: {}]
  %s7 = inlined_call_operand.vmem [shape: f32[2,1,32], index: 7, kind: input, shape index: {}]
  %s8 = inlined_call_operand.vmem [shape: f32[2,32,64], index: 8, kind: input, shape index: {}]
  %s9 = inlined_call_operand.vmem [shape: f32[2,1,64], index: 9, kind: input, shape index: {}]
  %s10 = inlined_call_operand.vmem [shape: f32[2,64,32], index: 10, kind: input, shape index: {}]
  %s11 = inlined_call_operand.vmem [shape: f32[2,1,32], index: 11, kind: input, shape index: {}]
  %s12 = inlined_call_operand.vmem [shape: f32[2,1,32], index: 12, kind: input, shape index: {}]
  %s13 = inlined_call_operand.vmem [shape: f32[2,1,32], index: 13, kind: input, shape index: {}]
  %s14 = inlined_call_operand.vmem [shape: f32[1,32], index: 14, kind: input, shape index: {}]
  %s15 = inlined_call_operand.vmem [shape: f32[1,32], index: 15, kind: input, shape index: {}]
  %s16 = inlined_call_operand.vmem [shape: f32[32,64], index: 16, kind: input, shape index: {}]
  %s17 = inlined_call_operand.vmem [shape: f32[1,64], index: 17, kind: input, shape index: {}]
  %s18 = inlined_call_operand.hbm [shape: f32[2,8,64], index: 18, kind: output, shape index: {}]
  %s19 = sld [smem:[#allocation0]]
  $region105: #{_lambda_.1} parent=0
    _
  %s21 = ssub.s32 1, %s19
  %s22 = scalar_select 0, %s21, %s19
  $region1: #{_lambda_.1} parent=0
    #allocation2 [shape = 'u8[8192]{0}', space=vmem, size = 0x2000, scoped, tag = 'output window, operand 0']
    #allocation3 [shape = 's32[2]{0}', space=sflag, size = 0x8, scoped, tag = 'scoped memory for _lambda_.1']
    %23 = vsyncpa [#allocation3], 0
    %s24 = scalar_lea.sflag [#allocation3], 1
    %25 = vsyncpa %s24, 0
    loop: start=0, step=1, limit=4
    $region2: #{_lambda_.1} parent=1 // loop_pre_header
      _
    $region3: #{_lambda_.1} parent=1 // loop_header
      %s27 = sphi 0, %s31
      %p28 = scmp.ge.s32.totalorder %s27, 4
      %s37 = sphi 0, %s39
      %s40 = sphi 0, %s37
      %s41 = sphi 0, %s40
      %s57 = sphi 0, %s41
      %s63 = sphi 0, %s65
      %s66 = sphi 0, %s63
      %s67 = sphi 0, %s66
      %s83 = sphi 0, %s67
      %s87 = sphi 0, %s87
      %s89 = sphi 0, %s87
      %s90 = sphi 0, %s89
      %s104 = sphi 0, %s90
      %s108 = sphi 0, %s108
      %s110 = sphi 0, %s108
      %s111 = sphi 0, %s110
      %s125 = sphi 0, %s111
      %s129 = sphi 0, %s129
      %s131 = sphi 0, %s129
      %s132 = sphi 0, %s131
      %s146 = sphi 0, %s132
      %s150 = sphi 0, %s150
      %s152 = sphi 0, %s150
      %s153 = sphi 0, %s152
      %s167 = sphi 0, %s153
      %s171 = sphi 0, %s171
      %s173 = sphi 0, %s171
      %s174 = sphi 0, %s173
      %s188 = sphi 0, %s174
      %s192 = sphi 0, %s192
      %s194 = sphi 0, %s192
      %s195 = sphi 0, %s194
      %s209 = sphi 0, %s195
      %s213 = sphi 0, %s213
      %s215 = sphi 0, %s213
      %s216 = sphi 0, %s215
      %s230 = sphi 0, %s216
      %s234 = sphi 0, %s234
      %s236 = sphi 0, %s234
      %s237 = sphi 0, %s236
      %s251 = sphi 0, %s237
      %s255 = sphi 0, %s255
      %s257 = sphi 0, %s255
      %s258 = sphi 0, %s257
      %s272 = sphi 0, %s258
      %s276 = sphi 0, %s276
      %s278 = sphi 0, %s276
      %s279 = sphi 0, %s278
      %s293 = sphi 0, %s279
      %s297 = sphi 0, %s297
      %s299 = sphi 0, %s297
      %s300 = sphi 0, %s299
      %s314 = sphi 0, %s300
      %s318 = sphi 0, %s318
      %s320 = sphi 0, %s318
      %s321 = sphi 0, %s320
      %s335 = sphi 0, %s321
      %s339 = sphi 0, %s339
      %s341 = sphi 0, %s339
      %s342 = sphi 0, %s341
      %s356 = sphi 0, %s342
      %s360 = sphi 0, %s360
      %s362 = sphi 0, %s360
      %s363 = sphi 0, %s362
      %s377 = sphi 0, %s363
      %s381 = sphi 0, %s381
      %s383 = sphi 0, %s381
      %s384 = sphi 0, %s383
      %s398 = sphi 0, %s384
      %s402 = sphi 0, %s402
      %s404 = sphi 0, %s402
      %s405 = sphi 0, %s404
      %s419 = sphi 0, %s405
      %s425 = sphi 0, %s427
      %s428 = sphi 0, %s425
      %s429 = sphi 0, %s428
      %s445 = sphi 0, %s429
    $region4: #{_lambda_.1} parent=1 // loop_header_branch
      %30 = sbr.rel (%p28) target = $region8
    $region5: #{_lambda_.1} parent=1 // loop_body
      %s32 = ssub.s32 %s27, 1
      %s33 = ssub.s32 %s27, 2
      %s34 = sadd.s32 %s27, 1
      %s35 = ssub.s32 %s27, %s34
      %p36 = scmp.eq.s32.totalorder %s35, 0
      %s38 = sadd.s32 %s37, 1
      %s39 = scalar_select %p36, %s37, %s38
      %p42 = pneg %p36
      %p43 = scmp.eq.s32.totalorder %s27, 1
      %p44 = por %p42, %p43
      %p45 = scmp.ne.s32.totalorder %s37, %s40
      %p46 = scmp.eq.s32.totalorder %s27, 0
      %p47 = por %p45, %p46
      %p48 = scmp.ne.s32.totalorder %s37, %s40
      %p49 = scmp.eq.s32.totalorder %s32, 1
      %p50 = por %p48, %p49
      %p51 = scmp.ne.s32.totalorder %s40, %s41
      %p52 = scmp.eq.s32.totalorder %s32, 0
      %p53 = por %p51, %p52
      %p54 = scmp.ne.s32.totalorder %s40, %s41
      %p55 = scmp.eq.s32.totalorder %s33, 1
      %p56 = por %p54, %p55
      %p58 = scmp.ne.s32.totalorder %s41, %s57
      %p59 = scmp.eq.s32.totalorder %s33, 0
      %p60 = por %p58, %p59
      %s61 = ssub.s32 %s27, %s34
      %p62 = scmp.eq.s32.totalorder %s61, 0
      %s64 = sadd.s32 %s63, 1
      %s65 = scalar_select %p62, %s63, %s64
      %p68 = pneg %p62
      %p69 = scmp.eq.s32.totalorder %s27, 1
      %p70 = por %p68, %p69
      %p71 = scmp.ne.s32.totalorder %s63, %s66
      %p72 = scmp.eq.s32.totalorder %s27, 0
      %p73 = por %p71, %p72
      %p74 = scmp.ne.s32.totalorder %s63, %s66
      %p75 = scmp.eq.s32.totalorder %s32, 1
      %p76 = por %p74, %p75
      %p77 = scmp.ne.s32.totalorder %s66, %s67
      %p78 = scmp.eq.s32.totalorder %s32, 0
      %p79 = por %p77, %p78
      %p80 = scmp.ne.s32.totalorder %s66, %s67
      %p81 = scmp.eq.s32.totalorder %s33, 1
      %p82 = por %p80, %p81
      %p84 = scmp.ne.s32.totalorder %s67, %s83
      %p85 = scmp.eq.s32.totalorder %s33, 0
      %p86 = por %p84, %p85
      %s88 = sadd.s32 %s87, 1
      %p91 = scmp.eq.s32.totalorder %s27, 1
      %p92 = scmp.ne.s32.totalorder %s87, %s89
      %p93 = scmp.eq.s32.totalorder %s27, 0
      %p94 = por %p92, %p93
      %p95 = scmp.ne.s32.totalorder %s87, %s89
      %p96 = scmp.eq.s32.totalorder %s32, 1
      %p97 = por %p95, %p96
      %p98 = scmp.ne.s32.totalorder %s89, %s90
      %p99 = scmp.eq.s32.totalorder %s32, 0
      %p100 = por %p98, %p99
      %p101 = scmp.ne.s32.totalorder %s89, %s90
      %p102 = scmp.eq.s32.totalorder %s33, 1
      %p103 = por %p101, %p102
      %p105 = scmp.ne.s32.totalorder %s90, %s104
      %p106 = scmp.eq.s32.totalorder %s33, 0
      %p107 = por %p105, %p106
      %s109 = sadd.s32 %s108, 1
      %p112 = scmp.eq.s32.totalorder %s27, 1
      %p113 = scmp.ne.s32.totalorder %s108, %s110
      %p114 = scmp.eq.s32.totalorder %s27, 0
      %p115 = por %p113, %p114
      %p116 = scmp.ne.s32.totalorder %s108, %s110
      %p117 = scmp.eq.s32.totalorder %s32, 1
      %p118 = por %p116, %p117
      %p119 = scmp.ne.s32.totalorder %s110, %s111
      %p120 = scmp.eq.s32.totalorder %s32, 0
      %p121 = por %p119, %p120
      %p122 = scmp.ne.s32.totalorder %s110, %s111
      %p123 = scmp.eq.s32.totalorder %s33, 1
      %p124 = por %p122, %p123
      %p126 = scmp.ne.s32.totalorder %s111, %s125
      %p127 = scmp.eq.s32.totalorder %s33, 0
      %p128 = por %p126, %p127
      %s130 = sadd.s32 %s129, 1
      %p133 = scmp.eq.s32.totalorder %s27, 1
      %p134 = scmp.ne.s32.totalorder %s129, %s131
      %p135 = scmp.eq.s32.totalorder %s27, 0
      %p136 = por %p134, %p135
      %p137 = scmp.ne.s32.totalorder %s129, %s131
      %p138 = scmp.eq.s32.totalorder %s32, 1
      %p139 = por %p137, %p138
      %p140 = scmp.ne.s32.totalorder %s131, %s132
      %p141 = scmp.eq.s32.totalorder %s32, 0
      %p142 = por %p140, %p141
      %p143 = scmp.ne.s32.totalorder %s131, %s132
      %p144 = scmp.eq.s32.totalorder %s33, 1
      %p145 = por %p143, %p144
      %p147 = scmp.ne.s32.totalorder %s132, %s146
      %p148 = scmp.eq.s32.totalorder %s33, 0
      %p149 = por %p147, %p148
      %s151 = sadd.s32 %s150, 1
      %p154 = scmp.eq.s32.totalorder %s27, 1
      %p155 = scmp.ne.s32.totalorder %s150, %s152
      %p156 = scmp.eq.s32.totalorder %s27, 0
      %p157 = por %p155, %p156
      %p158 = scmp.ne.s32.totalorder %s150, %s152
      %p159 = scmp.eq.s32.totalorder %s32, 1
      %p160 = por %p158, %p159
      %p161 = scmp.ne.s32.totalorder %s152, %s153
      %p162 = scmp.eq.s32.totalorder %s32, 0
      %p163 = por %p161, %p162
      %p164 = scmp.ne.s32.totalorder %s152, %s153
      %p165 = scmp.eq.s32.totalorder %s33, 1
      %p166 = por %p164, %p165
      %p168 = scmp.ne.s32.totalorder %s153, %s167
      %p169 = scmp.eq.s32.totalorder %s33, 0
      %p170 = por %p168, %p169
      %s172 = sadd.s32 %s171, 1
      %p175 = scmp.eq.s32.totalorder %s27, 1
      %p176 = scmp.ne.s32.totalorder %s171, %s173
      %p177 = scmp.eq.s32.totalorder %s27, 0
      %p178 = por %p176, %p177
      %p179 = scmp.ne.s32.totalorder %s171, %s173
      %p180 = scmp.eq.s32.totalorder %s32, 1
      %p181 = por %p179, %p180
      %p182 = scmp.ne.s32.totalorder %s173, %s174
      %p183 = scmp.eq.s32.totalorder %s32, 0
      %p184 = por %p182, %p183
      %p185 = scmp.ne.s32.totalorder %s173, %s174
      %p186 = scmp.eq.s32.totalorder %s33, 1
      %p187 = por %p185, %p186
      %p189 = scmp.ne.s32.totalorder %s174, %s188
      %p190 = scmp.eq.s32.totalorder %s33, 0
      %p191 = por %p189, %p190
      %s193 = sadd.s32 %s192, 1
      %p196 = scmp.eq.s32.totalorder %s27, 1
      %p197 = scmp.ne.s32.totalorder %s192, %s194
      %p198 = scmp.eq.s32.totalorder %s27, 0
      %p199 = por %p197, %p198
      %p200 = scmp.ne.s32.totalorder %s192, %s194
      %p201 = scmp.eq.s32.totalorder %s32, 1
      %p202 = por %p200, %p201
      %p203 = scmp.ne.s32.totalorder %s194, %s195
      %p204 = scmp.eq.s32.totalorder %s32, 0
      %p205 = por %p203, %p204
      %p206 = scmp.ne.s32.totalorder %s194, %s195
      %p207 = scmp.eq.s32.totalorder %s33, 1
      %p208 = por %p206, %p207
      %p210 = scmp.ne.s32.totalorder %s195, %s209
      %p211 = scmp.eq.s32.totalorder %s33, 0
      %p212 = por %p210, %p211
      %s214 = sadd.s32 %s213, 1
      %p217 = scmp.eq.s32.totalorder %s27, 1
      %p218 = scmp.ne.s32.totalorder %s213, %s215
      %p219 = scmp.eq.s32.totalorder %s27, 0
      %p220 = por %p218, %p219
      %p221 = scmp.ne.s32.totalorder %s213, %s215
      %p222 = scmp.eq.s32.totalorder %s32, 1
      %p223 = por %p221, %p222
      %p224 = scmp.ne.s32.totalorder %s215, %s216
      %p225 = scmp.eq.s32.totalorder %s32, 0
      %p226 = por %p224, %p225
      %p227 = scmp.ne.s32.totalorder %s215, %s216
      %p228 = scmp.eq.s32.totalorder %s33, 1
      %p229 = por %p227, %p228
      %p231 = scmp.ne.s32.totalorder %s216, %s230
      %p232 = scmp.eq.s32.totalorder %s33, 0
      %p233 = por %p231, %p232
      %s235 = sadd.s32 %s234, 1
      %p238 = scmp.eq.s32.totalorder %s27, 1
      %p239 = scmp.ne.s32.totalorder %s234, %s236
      %p240 = scmp.eq.s32.totalorder %s27, 0
      %p241 = por %p239, %p240
      %p242 = scmp.ne.s32.totalorder %s234, %s236
      %p243 = scmp.eq.s32.totalorder %s32, 1
      %p244 = por %p242, %p243
      %p245 = scmp.ne.s32.totalorder %s236, %s237
      %p246 = scmp.eq.s32.totalorder %s32, 0
      %p247 = por %p245, %p246
      %p248 = scmp.ne.s32.totalorder %s236, %s237
      %p249 = scmp.eq.s32.totalorder %s33, 1
      %p250 = por %p248, %p249
      %p252 = scmp.ne.s32.totalorder %s237, %s251
      %p253 = scmp.eq.s32.totalorder %s33, 0
      %p254 = por %p252, %p253
      %s256 = sadd.s32 %s255, 1
      %p259 = scmp.eq.s32.totalorder %s27, 1
      %p260 = scmp.ne.s32.totalorder %s255, %s257
      %p261 = scmp.eq.s32.totalorder %s27, 0
      %p262 = por %p260, %p261
      %p263 = scmp.ne.s32.totalorder %s255, %s257
      %p264 = scmp.eq.s32.totalorder %s32, 1
      %p265 = por %p263, %p264
      %p266 = scmp.ne.s32.totalorder %s257, %s258
      %p267 = scmp.eq.s32.totalorder %s32, 0
      %p268 = por %p266, %p267
      %p269 = scmp.ne.s32.totalorder %s257, %s258
      %p270 = scmp.eq.s32.totalorder %s33, 1
      %p271 = por %p269, %p270
      %p273 = scmp.ne.s32.totalorder %s258, %s272
      %p274 = scmp.eq.s32.totalorder %s33, 0
      %p275 = por %p273, %p274
      %s277 = sadd.s32 %s276, 1
      %p280 = scmp.eq.s32.totalorder %s27, 1
      %p281 = scmp.ne.s32.totalorder %s276, %s278
      %p282 = scmp.eq.s32.totalorder %s27, 0
      %p283 = por %p281, %p282
      %p284 = scmp.ne.s32.totalorder %s276, %s278
      %p285 = scmp.eq.s32.totalorder %s32, 1
      %p286 = por %p284, %p285
      %p287 = scmp.ne.s32.totalorder %s278, %s279
      %p288 = scmp.eq.s32.totalorder %s32, 0
      %p289 = por %p287, %p288
      %p290 = scmp.ne.s32.totalorder %s278, %s279
      %p291 = scmp.eq.s32.totalorder %s33, 1
      %p292 = por %p290, %p291
      %p294 = scmp.ne.s32.totalorder %s279, %s293
      %p295 = scmp.eq.s32.totalorder %s33, 0
      %p296 = por %p294, %p295
      %s298 = sadd.s32 %s297, 1
      %p301 = scmp.eq.s32.totalorder %s27, 1
      %p302 = scmp.ne.s32.totalorder %s297, %s299
      %p303 = scmp.eq.s32.totalorder %s27, 0
      %p304 = por %p302, %p303
      %p305 = scmp.ne.s32.totalorder %s297, %s299
      %p306 = scmp.eq.s32.totalorder %s32, 1
      %p307 = por %p305, %p306
      %p308 = scmp.ne.s32.totalorder %s299, %s300
      %p309 = scmp.eq.s32.totalorder %s32, 0
      %p310 = por %p308, %p309
      %p311 = scmp.ne.s32.totalorder %s299, %s300
      %p312 = scmp.eq.s32.totalorder %s33, 1
      %p313 = por %p311, %p312
      %p315 = scmp.ne.s32.totalorder %s300, %s314
      %p316 = scmp.eq.s32.totalorder %s33, 0
      %p317 = por %p315, %p316
      %s319 = sadd.s32 %s318, 1
      %p322 = scmp.eq.s32.totalorder %s27, 1
      %p323 = scmp.ne.s32.totalorder %s318, %s320
      %p324 = scmp.eq.s32.totalorder %s27, 0
      %p325 = por %p323, %p324
      %p326 = scmp.ne.s32.totalorder %s318, %s320
      %p327 = scmp.eq.s32.totalorder %s32, 1
      %p328 = por %p326, %p327
      %p329 = scmp.ne.s32.totalorder %s320, %s321
      %p330 = scmp.eq.s32.totalorder %s32, 0
      %p331 = por %p329, %p330
      %p332 = scmp.ne.s32.totalorder %s320, %s321
      %p333 = scmp.eq.s32.totalorder %s33, 1
      %p334 = por %p332, %p333
      %p336 = scmp.ne.s32.totalorder %s321, %s335
      %p337 = scmp.eq.s32.totalorder %s33, 0
      %p338 = por %p336, %p337
      %s340 = sadd.s32 %s339, 1
      %p343 = scmp.eq.s32.totalorder %s27, 1
      %p344 = scmp.ne.s32.totalorder %s339, %s341
      %p345 = scmp.eq.s32.totalorder %s27, 0
      %p346 = por %p344, %p345
      %p347 = scmp.ne.s32.totalorder %s339, %s341
      %p348 = scmp.eq.s32.totalorder %s32, 1
      %p349 = por %p347, %p348
      %p350 = scmp.ne.s32.totalorder %s341, %s342
      %p351 = scmp.eq.s32.totalorder %s32, 0
      %p352 = por %p350, %p351
      %p353 = scmp.ne.s32.totalorder %s341, %s342
      %p354 = scmp.eq.s32.totalorder %s33, 1
      %p355 = por %p353, %p354
      %p357 = scmp.ne.s32.totalorder %s342, %s356
      %p358 = scmp.eq.s32.totalorder %s33, 0
      %p359 = por %p357, %p358
      %s361 = sadd.s32 %s360, 1
      %p364 = scmp.eq.s32.totalorder %s27, 1
      %p365 = scmp.ne.s32.totalorder %s360, %s362
      %p366 = scmp.eq.s32.totalorder %s27, 0
      %p367 = por %p365, %p366
      %p368 = scmp.ne.s32.totalorder %s360, %s362
      %p369 = scmp.eq.s32.totalorder %s32, 1
      %p370 = por %p368, %p369
      %p371 = scmp.ne.s32.totalorder %s362, %s363
      %p372 = scmp.eq.s32.totalorder %s32, 0
      %p373 = por %p371, %p372
      %p374 = scmp.ne.s32.totalorder %s362, %s363
      %p375 = scmp.eq.s32.totalorder %s33, 1
      %p376 = por %p374, %p375
      %p378 = scmp.ne.s32.totalorder %s363, %s377
      %p379 = scmp.eq.s32.totalorder %s33, 0
      %p380 = por %p378, %p379
      %s382 = sadd.s32 %s381, 1
      %p385 = scmp.eq.s32.totalorder %s27, 1
      %p386 = scmp.ne.s32.totalorder %s381, %s383
      %p387 = scmp.eq.s32.totalorder %s27, 0
      %p388 = por %p386, %p387
      %p389 = scmp.ne.s32.totalorder %s381, %s383
      %p390 = scmp.eq.s32.totalorder %s32, 1
      %p391 = por %p389, %p390
      %p392 = scmp.ne.s32.totalorder %s383, %s384
      %p393 = scmp.eq.s32.totalorder %s32, 0
      %p394 = por %p392, %p393
      %p395 = scmp.ne.s32.totalorder %s383, %s384
      %p396 = scmp.eq.s32.totalorder %s33, 1
      %p397 = por %p395, %p396
      %p399 = scmp.ne.s32.totalorder %s384, %s398
      %p400 = scmp.eq.s32.totalorder %s33, 0
      %p401 = por %p399, %p400
      %s403 = sadd.s32 %s402, 1
      %p406 = scmp.eq.s32.totalorder %s27, 1
      %p407 = scmp.ne.s32.totalorder %s402, %s404
      %p408 = scmp.eq.s32.totalorder %s27, 0
      %p409 = por %p407, %p408
      %p410 = scmp.ne.s32.totalorder %s402, %s404
      %p411 = scmp.eq.s32.totalorder %s32, 1
      %p412 = por %p410, %p411
      %p413 = scmp.ne.s32.totalorder %s404, %s405
      %p414 = scmp.eq.s32.totalorder %s32, 0
      %p415 = por %p413, %p414
      %p416 = scmp.ne.s32.totalorder %s404, %s405
      %p417 = scmp.eq.s32.totalorder %s33, 1
      %p418 = por %p416, %p417
      %p420 = scmp.ne.s32.totalorder %s405, %s419
      %p421 = scmp.eq.s32.totalorder %s33, 0
      %p422 = por %p420, %p421
      %s423 = ssub.s32 %s27, %s34
      %p424 = scmp.eq.s32.totalorder %s423, 0
      %s426 = sadd.s32 %s425, 1
      %s427 = scalar_select %p424, %s425, %s426
      %p430 = pneg %p424
      %p431 = scmp.eq.s32.totalorder %s27, 1
      %p432 = por %p430, %p431
      %p433 = scmp.ne.s32.totalorder %s425, %s428
      %p434 = scmp.eq.s32.totalorder %s27, 0
      %p435 = por %p433, %p434
      %p436 = scmp.ne.s32.totalorder %s425, %s428
      %p437 = scmp.eq.s32.totalorder %s32, 1
      %p438 = por %p436, %p437
      %p439 = scmp.ne.s32.totalorder %s428, %s429
      %p440 = scmp.eq.s32.totalorder %s32, 0
      %p441 = por %p439, %p440
      %p442 = scmp.ne.s32.totalorder %s428, %s429
      %p443 = scmp.eq.s32.totalorder %s33, 1
      %p444 = por %p442, %p443
      %p446 = scmp.ne.s32.totalorder %s429, %s445
      %p447 = scmp.eq.s32.totalorder %s33, 0
      %p448 = por %p446, %p447
      %p449 = scmp.le.s32.totalorder 1, %s27
      %p450 = scmp.lt.s32.totalorder %s27, 3
      %p451 = pnand %p449, %p450
      %p452 = pneg %p451
      // Predicated region
      $region9: #{_lambda_.1} parent=5 // pred_check
        _
      $region10: #{_lambda_.1} parent=5 // pred_check_branch
        %454 = sbr.rel (%p451) target = $region12
      $region11: #{_lambda_.1} parent=5 // pred_region
        %s455 = ssub.s32 %s27, 1
        // Predicated region
        $region13: #{_lambda_.1} parent=11 // pred_check
          %p456 = pneg %p100
        $region14: #{_lambda_.1} parent=11 // pred_check_branch
          %458 = sbr.rel (%p456) target = $region16
        $region15: #{_lambda_.1} parent=11 // pred_region
          _
        $region16: #{_lambda_.1} parent=11 // pred_fallthru
          _
        // Predicated region
        $region17: #{_lambda_.1} parent=11 // pred_check
          %p459 = pneg %p121
        $region18: #{_lambda_.1} parent=11 // pred_check_branch
          %461 = sbr.rel (%p459) target = $region20
        $region19: #{_lambda_.1} parent=11 // pred_region
          _
        $region20: #{_lambda_.1} parent=11 // pred_fallthru
          _
        // Predicated region
        $region21: #{_lambda_.1} parent=11 // pred_check
          %p462 = pneg %p142
        $region22: #{_lambda_.1} parent=11 // pred_check_branch
          %464 = sbr.rel (%p462) target = $region24
        $region23: #{_lambda_.1} parent=11 // pred_region
          _
        $region24: #{_lambda_.1} parent=11 // pred_fallthru
          _
        // Predicated region
        $region25: #{_lambda_.1} parent=11 // pred_check
          %p465 = pneg %p163
        $region26: #{_lambda_.1} parent=11 // pred_check_branch
          %467 = sbr.rel (%p465) target = $region28
        $region27: #{_lambda_.1} parent=11 // pred_region
          _
        $region28: #{_lambda_.1} parent=11 // pred_fallthru
          _
        // Predicated region
        $region29: #{_lambda_.1} parent=11 // pred_check
          %p468 = pneg %p184
        $region30: #{_lambda_.1} parent=11 // pred_check_branch
          %470 = sbr.rel (%p468) target = $region32
        $region31: #{_lambda_.1} parent=11 // pred_region
          _
        $region32: #{_lambda_.1} parent=11 // pred_fallthru
          _
        // Predicated region
        $region33: #{_lambda_.1} parent=11 // pred_check
          %p471 = pneg %p205
        $region34: #{_lambda_.1} parent=11 // pred_check_branch
          %473 = sbr.rel (%p471) target = $region36
        $region35: #{_lambda_.1} parent=11 // pred_region
          _
        $region36: #{_lambda_.1} parent=11 // pred_fallthru
          _
        // Predicated region
        $region37: #{_lambda_.1} parent=11 // pred_check
          %p474 = pneg %p226
        $region38: #{_lambda_.1} parent=11 // pred_check_branch
          %476 = sbr.rel (%p474) target = $region40
        $region39: #{_lambda_.1} parent=11 // pred_region
          _
        $region40: #{_lambda_.1} parent=11 // pred_fallthru
          _
        // Predicated region
        $region41: #{_lambda_.1} parent=11 // pred_check
          %p477 = pneg %p247
        $region42: #{_lambda_.1} parent=11 // pred_check_branch
          %479 = sbr.rel (%p477) target = $region44
        $region43: #{_lambda_.1} parent=11 // pred_region
          _
        $region44: #{_lambda_.1} parent=11 // pred_fallthru
          _
        // Predicated region
        $region45: #{_lambda_.1} parent=11 // pred_check
          %p480 = pneg %p268
        $region46: #{_lambda_.1} parent=11 // pred_check_branch
          %482 = sbr.rel (%p480) target = $region48
        $region47: #{_lambda_.1} parent=11 // pred_region
          _
        $region48: #{_lambda_.1} parent=11 // pred_fallthru
          _
        // Predicated region
        $region49: #{_lambda_.1} parent=11 // pred_check
          %p483 = pneg %p289
        $region50: #{_lambda_.1} parent=11 // pred_check_branch
          %485 = sbr.rel (%p483) target = $region52
        $region51: #{_lambda_.1} parent=11 // pred_region
          _
        $region52: #{_lambda_.1} parent=11 // pred_fallthru
          _
        // Predicated region
        $region53: #{_lambda_.1} parent=11 // pred_check
          %p486 = pneg %p310
        $region54: #{_lambda_.1} parent=11 // pred_check_branch
          %488 = sbr.rel (%p486) target = $region56
        $region55: #{_lambda_.1} parent=11 // pred_region
          _
        $region56: #{_lambda_.1} parent=11 // pred_fallthru
          _
        // Predicated region
        $region57: #{_lambda_.1} parent=11 // pred_check
          %p489 = pneg %p331
        $region58: #{_lambda_.1} parent=11 // pred_check_branch
          %491 = sbr.rel (%p489) target = $region60
        $region59: #{_lambda_.1} parent=11 // pred_region
          _
        $region60: #{_lambda_.1} parent=11 // pred_fallthru
          _
        // Predicated region
        $region61: #{_lambda_.1} parent=11 // pred_check
          %p492 = pneg %p352
        $region62: #{_lambda_.1} parent=11 // pred_check_branch
          %494 = sbr.rel (%p492) target = $region64
        $region63: #{_lambda_.1} parent=11 // pred_region
          _
        $region64: #{_lambda_.1} parent=11 // pred_fallthru
          _
        // Predicated region
        $region65: #{_lambda_.1} parent=11 // pred_check
          %p495 = pneg %p373
        $region66: #{_lambda_.1} parent=11 // pred_check_branch
          %497 = sbr.rel (%p495) target = $region68
        $region67: #{_lambda_.1} parent=11 // pred_region
          _
        $region68: #{_lambda_.1} parent=11 // pred_fallthru
          _
        // Predicated region
        $region69: #{_lambda_.1} parent=11 // pred_check
          %p498 = pneg %p394
        $region70: #{_lambda_.1} parent=11 // pred_check_branch
          %500 = sbr.rel (%p498) target = $region72
        $region71: #{_lambda_.1} parent=11 // pred_region
          _
        $region72: #{_lambda_.1} parent=11 // pred_fallthru
          _
        // Predicated region
        $region73: #{_lambda_.1} parent=11 // pred_check
          %p501 = pneg %p415
        $region74: #{_lambda_.1} parent=11 // pred_check_branch
          %503 = sbr.rel (%p501) target = $region76
        $region75: #{_lambda_.1} parent=11 // pred_region
          _
        $region76: #{_lambda_.1} parent=11 // pred_fallthru
          _
      $region12: #{_lambda_.1} parent=5 // pred_fallthru
        _
      %p504 = scmp.lt.s32.totalorder %s27, 2
      // Predicated region
      $region77: #{_lambda_.1} parent=5 // pred_check
        %p505 = pneg %p504
      $region78: #{_lambda_.1} parent=5 // pred_check_branch
        %507 = sbr.rel (%p505) target = $region80
      $region79: #{_lambda_.1} parent=5 // pred_region
        // Predicated region
        $region81: #{_lambda_.1} parent=79 // pred_check
          %p508 = pneg %p47
        $region82: #{_lambda_.1} parent=79 // pred_check_branch
          %510 = sbr.rel (%p508) target = $region84
        $region83: #{_lambda_.1} parent=79 // pred_region
          %p511 = scmp.lt.s32.totalorder %s27, 1
          %s512 = scalar_select %p511, %s27, 1
          %s513 = smul.addr %s512, 8
          %s514 = scalar_lea.vmem %s0, %s513
        $region84: #{_lambda_.1} parent=79 // pred_fallthru
          _
        // Predicated region
        $region85: #{_lambda_.1} parent=79 // pred_check
          %p515 = pneg %p73
        $region86: #{_lambda_.1} parent=79 // pred_check_branch
          %517 = sbr.rel (%p515) target = $region88
        $region87: #{_lambda_.1} parent=79 // pred_region
          %p518 = scmp.lt.s32.totalorder %s27, 1
          %s519 = scalar_select %p518, %s27, 1
          %s520 = scalar_lea.vmem %s1, %s519
        $region88: #{_lambda_.1} parent=79 // pred_fallthru
          _
      $region80: #{_lambda_.1} parent=5 // pred_fallthru
        _
      %p521 = scmp.le.s32.totalorder 1, %s27
      %p522 = scmp.lt.s32.totalorder %s27, 3
      %p523 = pnand %p521, %p522
      %p524 = pneg %p523
      // Predicated region
      $region89: #{_lambda_.1} parent=5 // pred_check
        _
      $region90: #{_lambda_.1} parent=5 // pred_check_branch
        %526 = sbr.rel (%p523) target = $region92
      $region91: #{_lambda_.1} parent=5 // pred_region
        %s527 = ssub.s32 %s27, 1
        %p528 = scmp.lt.s32.totalorder %s32, 1
        %s529 = scalar_select %p528, %s32, 1
        %s530 = smul.addr %s529, 8
        %s531 = scalar_lea.vmem %s0, %s530
        %p532 = pneg %p53
        %p533 = pneg %p50
        %p534 = scmp.lt.s32.totalorder %s32, 1
        %s535 = scalar_select %p534, %s32, 1
        %s536 = scalar_lea.vmem %s1, %s535
        %p537 = pneg %p79
        %p538 = pneg %p76
        %p539 = pneg %p100
        %p540 = pneg %p97
        %p541 = pneg %p121
        %p542 = pneg %p118
        %p543 = pneg %p142
        %p544 = pneg %p139
        %p545 = pneg %p163
        %p546 = pneg %p160
        %p547 = pneg %p184
        %p548 = pneg %p181
        %p549 = pneg %p205
        %p550 = pneg %p202
        %p551 = pneg %p226
        %p552 = pneg %p223
        %p553 = pneg %p247
        %p554 = pneg %p244
        %p555 = pneg %p268
        %p556 = pneg %p265
        %p557 = pneg %p289
        %p558 = pneg %p286
        %p559 = pneg %p310
        %p560 = pneg %p307
        %p561 = pneg %p331
        %p562 = pneg %p328
        %p563 = pneg %p352
        %p564 = pneg %p349
        %p565 = pneg %p373
        %p566 = pneg %p370
        %p567 = pneg %p394
        %p568 = pneg %p391
        %p569 = pneg %p415
        %p570 = pneg %p412
        %p571 = pneg %p441
        %p572 = pneg %p438
        %s573 = sand.u32 %s428, 1
        %s574 = scalar_lea.sflag [#allocation3], %s573
        %s575 = sand.u32 %s428, 1
        %s576 = smul.addr %s575, 8
        %s577 = scalar_lea.vmem [#allocation2], %s576
        %p578 = scmp.lt.s32.totalorder %s32, 1
        %s579 = scalar_select %p578, %s32, 1
        %s580 = smul.addr %s579, 8
        %s581 = scalar_lea.vmem %s0, %s580
        %p582 = scmp.lt.s32.totalorder %s32, 1
        %s583 = scalar_select %p582, %s32, 1
        %s584 = scalar_lea.vmem %s1, %s583
        %v585 = vld [vmem:[%s581] sm:$0xff]
        %v586 = vld [vmem:[%s14] sm:$0x1]
        %v587 = vld [vmem:[%s15] sm:$0x1]
        %vm588 = vcmask 261120
        %v589 = vsel %vm588, %v585, 0.0
        %590 = vadd.xlane.f32.xlu0 %v589
        %v591 = vpop.xlane.xlu0 %590
        %v592 = vrcp.pop 32.0
        %v593 = vmul.f32 32.0, %v592
        %v594 = vsub.f32 1.0, %v593
        %v595 = vmul.f32 %v592, %v594
        %v596 = vadd.f32 %v592, %v595
        %vm597 = vweird.f32 %v592
        %v598 = vsel %vm597, %v592, %v596
        %v599 = vmul.f32 %v591, %v598
        %v600 = vsub.f32 %v585, %v599
        %v601 = vmul.f32 %v600, %v600
        %v602 = vsel %vm588, %v601, 0.0
        %603 = vadd.xlane.f32.xlu0 %v602
        %v604 = vpop.xlane.xlu0 %603
        %v605 = vmul.f32 %v604, %v598
        %v606 = vadd.f32 %v605, 1e-12
        %v607 = vrsqrt.pop %v606
        %v608 = vmul.f32 %v607, %v606
        %v609 = vmul.f32 %v608, %v607
        %v610 = vmul.f32 0.5, %v609
        %v611 = vsub.f32 1.5, %v610
        %v612 = vmul.f32 %v607, %v611
        %vm613 = vweird.f32 %v606
        %vm614 = vweird.f32 %v607
        %vm615 = vmor %vm613, %vm614
        %v616 = vsel %vm615, %v607, %v612
        %v617 = vmul.f32 %v600, %v616
        %v619 = vperm.slane %v586, 0
        %v621 = vmul.f32 %v617, %v619
        %v623 = vperm.slane %v587, 0
        %v625 = vadd.f32 %v621, %v623
        %v626 = vld [vmem:[%s584] sm:$0x1]
        %v627 = vld [vmem:[%s2] sm:$0xff]
        %v628 = vld [vmem:[%s2 + $0x8] sm:$0xff]
        %v629 = vld [vmem:[%s2 + $0x10] sm:$0xff]
        %v630 = vld [vmem:[%s2 + $0x18] sm:$0xff]
        %v631 = vld [vmem:[%s3] sm:$0x1]
        %v633 = vperm.slane %v631, 0
        %v636 = vsel %vm588, %v625, 0
        %638 = vmatpush.msra.mxu0 0.0
        %639 = vmatpush.msra.mxu0 0.0
        %640 = vmatpush.msra.mxu0 0.0
        %641 = vmatpush.msra.mxu0 0.0
        %642 = vmatpush.msra.mxu0 0.0
        %643 = vmatpush.msra.mxu0 0.0
        %644 = vmatpush.msra.mxu0 0.0
        %645 = vmatpush.msra.mxu0 0.0
        %646 = vmatpush.msra.mxu0 0.0
        %647 = vmatpush.msra.mxu0 0.0
        %648 = vmatpush.msra.mxu0 0.0
        %649 = vmatpush.msra.mxu0 0.0
        %650 = vmatpush.msra.mxu0 %v630
        %651 = vmatpush.msra.mxu0 %v629
        %652 = vmatpush.msra.mxu0 %v628
        %653 = vmatpush.msra.mxu0 %v627
        %654 = vmatmul.f32.gmra.mxu0 %v636
        %v655 = vpop.f32.mrf.mxu0
        %v656 = vadd.f32 %v633, %v655
        %657 = vdwg.mxu0
        %v658 = vld [vmem:[%s4] sm:$0xff]
        %v659 = vld [vmem:[%s4 + $0x8] sm:$0xff]
        %v660 = vld [vmem:[%s4 + $0x10] sm:$0xff]
        %v661 = vld [vmem:[%s4 + $0x18] sm:$0xff]
        %663 = vrot.lane.b32.xlu0 %v656, 96
        %v664 = vpop.permute.xlu0 %663
        %vm665 = vcmask 64512
        %v666 = vsel %vm665, %v656, 0
        %v668 = vsel %vm665, %v664, 0
        %670 = vmatpush.xpose.msra.mxu0 0.0
        %671 = vmatpush.xpose.msra.mxu0 0.0
        %672 = vmatpush.xpose.msra.mxu0 0.0
        %673 = vmatpush.xpose.msra.mxu0 0.0
        %674 = vmatpush.xpose.msra.mxu0 0.0
        %675 = vmatpush.xpose.msra.mxu0 0.0
        %676 = vmatpush.xpose.msra.mxu0 0.0
        %677 = vmatpush.xpose.msra.mxu0 0.0
        %678 = vmatpush.xpose.msra.mxu0 0.0
        %679 = vmatpush.xpose.msra.mxu0 0.0
        %680 = vmatpush.xpose.msra.mxu0 0.0
        %681 = vmatpush.xpose.msra.mxu0 0.0
        %682 = vmatpush.xpose.msra.mxu0 0.0
        %683 = vmatpush.xpose.msra.mxu0 0.0
        %684 = vmatpush.xpose.msra.mxu0 0.0
        %685 = vmatpush.xpose.msra.mxu0 %v668
        %686 = vmatmul.f32.gmra.mxu0 %v666
        %v687 = vpop.f32.mrf.mxu0
        %v688 = vadd.f32 0.0, %v687
        %689 = vdwg.mxu0
        %v690 = vmul.f32 %v688, 0.35355338
        %v692 = vperm.slane %v626, 0
        %v694 = vadd.f32 %v690, %v692
        %v695 = vsel %vm665, %v694, -inf
        %696 = vmax.xlane.f32.xlu0 %v695
        %v697 = vpop.xlane.xlu0 %696
        %v698 = vsub.f32 %v694, %v697
        %v699 = vmul.f32 %v698, 1.442695
        %v700 = vpow.pop %v699
        %v701 = vsel %vm665, %v700, 0.0
        %702 = vadd.xlane.f32.xlu0 %v701
        %v703 = vpop.xlane.xlu0 %702
        %v704 = vrcp.pop %v703
        %v705 = vmul.f32 %v700, %v704
        %706 = vrot.lane.b32.xlu0 %v656, 64
        %v707 = vpop.permute.xlu0 %706
        %v710 = vsel %vm665, %v705, 0
        %712 = vmatpush.msra.mxu0 0.0
        %713 = vmatpush.msra.mxu0 0.0
        %714 = vmatpush.msra.mxu0 0.0
        %715 = vmatpush.msra.mxu0 0.0
        %716 = vmatpush.msra.mxu0 0.0
        %717 = vmatpush.msra.mxu0 0.0
        %718 = vmatpush.msra.mxu0 0.0
        %719 = vmatpush.msra.mxu0 0.0
        %720 = vmatpush.msra.mxu0 0.0
        %721 = vmatpush.msra.mxu0 0.0
        %722 = vmatpush.msra.mxu0 0.0
        %723 = vmatpush.msra.mxu0 0.0
        %724 = vmatpush.msra.mxu0 0.0
        %725 = vmatpush.msra.mxu0 0.0
        %726 = vmatpush.msra.mxu0 0.0
        %727 = vmatpush.msra.mxu0 %v707
        %728 = vmatmul.f32.gmra.mxu0 %v710
        %v729 = vpop.f32.mrf.mxu0
        %v730 = vadd.f32 0.0, %v729
        %731 = vdwg.mxu0
        %732 = vrot.lane.b32.xlu0 %v656, 120
        %v733 = vpop.permute.xlu0 %732
        %734 = vrot.lane.b32.xlu0 %v656, 88
        %v735 = vpop.permute.xlu0 %734
        %v736 = vsel %vm665, %v733, 0
        %v738 = vsel %vm665, %v735, 0
        %740 = vmatpush.xpose.msra.mxu0 0.0
        %741 = vmatpush.xpose.msra.mxu0 0.0
        %742 = vmatpush.xpose.msra.mxu0 0.0
        %743 = vmatpush.xpose.msra.mxu0 0.0
        %744 = vmatpush.xpose.msra.mxu0 0.0
        %745 = vmatpush.xpose.msra.mxu0 0.0
        %746 = vmatpush.xpose.msra.mxu0 0.0
        %747 = vmatpush.xpose.msra.mxu0 0.0
        %748 = vmatpush.xpose.msra.mxu0 0.0
        %749 = vmatpush.xpose.msra.mxu0 0.0
        %750 = vmatpush.xpose.msra.mxu0 0.0
        %751 = vmatpush.xpose.msra.mxu0 0.0
        %752 = vmatpush.xpose.msra.mxu0 0.0
        %753 = vmatpush.xpose.msra.mxu0 0.0
        %754 = vmatpush.xpose.msra.mxu0 0.0
        %755 = vmatpush.xpose.msra.mxu0 %v738
        %756 = vmatmul.f32.gmra.mxu0 %v736
        %v757 = vpop.f32.mrf.mxu0
        %v758 = vadd.f32 0.0, %v757
        %759 = vdwg.mxu0
        %v760 = vmul.f32 %v758, 0.35355338
        %v761 = vadd.f32 %v760, %v692
        %v762 = vsel %vm665, %v761, -inf
        %763 = vmax.xlane.f32.xlu0 %v762
        %v764 = vpop.xlane.xlu0 %763
        %v765 = vsub.f32 %v761, %v764
        %v766 = vmul.f32 %v765, 1.442695
        %v767 = vpow.pop %v766
        %v768 = vsel %vm665, %v767, 0.0
        %769 = vadd.xlane.f32.xlu0 %v768
        %v770 = vpop.xlane.xlu0 %769
        %v771 = vrcp.pop %v770
        %v772 = vmul.f32 %v767, %v771
        %773 = vrot.lane.b32.xlu0 %v656, 56
        %v774 = vpop.permute.xlu0 %773
        %v777 = vsel %vm665, %v772, 0
        %779 = vmatpush.msra.mxu0 0.0
        %780 = vmatpush.msra.mxu0 0.0
        %781 = vmatpush.msra.mxu0 0.0
        %782 = vmatpush.msra.mxu0 0.0
        %783 = vmatpush.msra.mxu0 0.0
        %784 = vmatpush.msra.mxu0 0.0
        %785 = vmatpush.msra.mxu0 0.0
        %786 = vmatpush.msra.mxu0 0.0
        %787 = vmatpush.msra.mxu0 0.0
        %788 = vmatpush.msra.mxu0 0.0
        %789 = vmatpush.msra.mxu0 0.0
        %790 = vmatpush.msra.mxu0 0.0
        %791 = vmatpush.msra.mxu0 0.0
        %792 = vmatpush.msra.mxu0 0.0
        %793 = vmatpush.msra.mxu0 0.0
        %794 = vmatpush.msra.mxu0 %v774
        %795 = vmatmul.f32.gmra.mxu0 %v777
        %v796 = vpop.f32.mrf.mxu0
        %v797 = vadd.f32 0.0, %v796
        %798 = vdwg.mxu0
        %v800 = vsel %vm665, %v797, 0
        %802 = vmatpush.msra.mxu0 0.0
        %803 = vmatpush.msra.mxu0 0.0
        %804 = vmatpush.msra.mxu0 0.0
        %805 = vmatpush.msra.mxu0 0.0
        %806 = vmatpush.msra.mxu0 0.0
        %807 = vmatpush.msra.mxu0 0.0
        %808 = vmatpush.msra.mxu0 0.0
        %809 = vmatpush.msra.mxu0 0.0
        %810 = vmatpush.msra.mxu0 0.0
        %811 = vmatpush.msra.mxu0 0.0
        %812 = vmatpush.msra.mxu0 0.0
        %813 = vmatpush.msra.mxu0 0.0
        %814 = vmatpush.msra.mxu0 0.0
        %815 = vmatpush.msra.mxu0 0.0
        %816 = vmatpush.msra.mxu0 0.0
        %817 = vmatpush.msra.mxu0 %v659
        %818 = vmatmul.f32.gmra.mxu0 %v800
        %v819 = vpop.f32.mrf.mxu0
        %v820 = vadd.f32 0.0, %v819
        %821 = vdwg.mxu0
        %v823 = vsel %vm665, %v730, 0
        %825 = vmatpush.msra.mxu0 0.0
        %826 = vmatpush.msra.mxu0 0.0
        %827 = vmatpush.msra.mxu0 0.0
        %828 = vmatpush.msra.mxu0 0.0
        %829 = vmatpush.msra.mxu0 0.0
        %830 = vmatpush.msra.mxu0 0.0
        %831 = vmatpush.msra.mxu0 0.0
        %832 = vmatpush.msra.mxu0 0.0
        %833 = vmatpush.msra.mxu0 0.0
        %834 = vmatpush.msra.mxu0 0.0
        %835 = vmatpush.msra.mxu0 0.0
        %836 = vmatpush.msra.mxu0 0.0
        %837 = vmatpush.msra.mxu0 0.0
        %838 = vmatpush.msra.mxu0 0.0
        %839 = vmatpush.msra.mxu0 0.0
        %840 = vmatpush.msra.mxu0 %v658
        %841 = vmatmul.f32.gmra.mxu0 %v823
        %v842 = vpop.f32.mrf.mxu0
        %v843 = vadd.f32 %v820, %v842
        %844 = vdwg.mxu0
        %845 = vrot.lane.b32.xlu0 %v656, 112
        %v846 = vpop.permute.xlu0 %845
        %847 = vrot.lane.b32.xlu0 %v656, 80
        %v848 = vpop.permute.xlu0 %847
        %v849 = vsel %vm665, %v846, 0
        %v851 = vsel %vm665, %v848, 0
        %853 = vmatpush.xpose.msra.mxu0 0.0
        %854 = vmatpush.xpose.msra.mxu0 0.0
        %855 = vmatpush.xpose.msra.mxu0 0.0
        %856 = vmatpush.xpose.msra.mxu0 0.0
        %857 = vmatpush.xpose.msra.mxu0 0.0
        %858 = vmatpush.xpose.msra.mxu0 0.0
        %859 = vmatpush.xpose.msra.mxu0 0.0
        %860 = vmatpush.xpose.msra.mxu0 0.0
        %861 = vmatpush.xpose.msra.mxu0 0.0
        %862 = vmatpush.xpose.msra.mxu0 0.0
        %863 = vmatpush.xpose.msra.mxu0 0.0
        %864 = vmatpush.xpose.msra.mxu0 0.0
        %865 = vmatpush.xpose.msra.mxu0 0.0
        %866 = vmatpush.xpose.msra.mxu0 0.0
        %867 = vmatpush.xpose.msra.mxu0 0.0
        %868 = vmatpush.xpose.msra.mxu0 %v851
        %869 = vmatmul.f32.gmra.mxu0 %v849
        %v870 = vpop.f32.mrf.mxu0
        %v871 = vadd.f32 0.0, %v870
        %872 = vdwg.mxu0
        %v873 = vmul.f32 %v871, 0.35355338
        %v874 = vadd.f32 %v873, %v692
        %v875 = vsel %vm665, %v874, -inf
        %876 = vmax.xlane.f32.xlu0 %v875
        %v877 = vpop.xlane.xlu0 %876
        %v878 = vsub.f32 %v874, %v877
        %v879 = vmul.f32 %v878, 1.442695
        %v880 = vpow.pop %v879
        %v881 = vsel %vm665, %v880, 0.0
        %882 = vadd.xlane.f32.xlu0 %v881
        %v883 = vpop.xlane.xlu0 %882
        %v884 = vrcp.pop %v883
        %v885 = vmul.f32 %v880, %v884
        %886 = vrot.lane.b32.xlu0 %v656, 48
        %v887 = vpop.permute.xlu0 %886
        %v890 = vsel %vm665, %v885, 0
        %892 = vmatpush.msra.mxu0 0.0
        %893 = vmatpush.msra.mxu0 0.0
        %894 = vmatpush.msra.mxu0 0.0
        %895 = vmatpush.msra.mxu0 0.0
        %896 = vmatpush.msra.mxu0 0.0
        %897 = vmatpush.msra.mxu0 0.0
        %898 = vmatpush.msra.mxu0 0.0
        %899 = vmatpush.msra.mxu0 0.0
        %900 = vmatpush.msra.mxu0 0.0
        %901 = vmatpush.msra.mxu0 0.0
        %902 = vmatpush.msra.mxu0 0.0
        %903 = vmatpush.msra.mxu0 0.0
        %904 = vmatpush.msra.mxu0 0.0
        %905 = vmatpush.msra.mxu0 0.0
        %906 = vmatpush.msra.mxu0 0.0
        %907 = vmatpush.msra.mxu0 %v887
        %908 = vmatmul.f32.gmra.mxu0 %v890
        %v909 = vpop.f32.mrf.mxu0
        %v910 = vadd.f32 0.0, %v909
        %911 = vdwg.mxu0
        %v913 = vsel %vm665, %v910, 0
        %915 = vmatpush.msra.mxu0 0.0
        %916 = vmatpush.msra.mxu0 0.0
        %917 = vmatpush.msra.mxu0 0.0
        %918 = vmatpush.msra.mxu0 0.0
        %919 = vmatpush.msra.mxu0 0.0
        %920 = vmatpush.msra.mxu0 0.0
        %921 = vmatpush.msra.mxu0 0.0
        %922 = vmatpush.msra.mxu0 0.0
        %923 = vmatpush.msra.mxu0 0.0
        %924 = vmatpush.msra.mxu0 0.0
        %925 = vmatpush.msra.mxu0 0.0
        %926 = vmatpush.msra.mxu0 0.0
        %927 = vmatpush.msra.mxu0 0.0
        %928 = vmatpush.msra.mxu0 0.0
        %929 = vmatpush.msra.mxu0 0.0
        %930 = vmatpush.msra.mxu0 %v660
        %931 = vmatmul.f32.gmra.mxu0 %v913
        %v932 = vpop.f32.mrf.mxu0
        %v933 = vadd.f32 0.0, %v932
        %934 = vdwg.mxu0
        %v935 = vadd.f32 %v843, %v933
        %936 = vrot.lane.b32.xlu0 %v656, 104
        %v937 = vpop.permute.xlu0 %936
        %938 = vrot.lane.b32.xlu0 %v656, 72
        %v939 = vpop.permute.xlu0 %938
        %v940 = vsel %vm665, %v937, 0
        %v942 = vsel %vm665, %v939, 0
        %944 = vmatpush.xpose.msra.mxu0 0.0
        %945 = vmatpush.xpose.msra.mxu0 0.0
        %946 = vmatpush.xpose.msra.mxu0 0.0
        %947 = vmatpush.xpose.msra.mxu0 0.0
        %948 = vmatpush.xpose.msra.mxu0 0.0
        %949 = vmatpush.xpose.msra.mxu0 0.0
        %950 = vmatpush.xpose.msra.mxu0 0.0
        %951 = vmatpush.xpose.msra.mxu0 0.0
        %952 = vmatpush.xpose.msra.mxu0 0.0
        %953 = vmatpush.xpose.msra.mxu0 0.0
        %954 = vmatpush.xpose.msra.mxu0 0.0
        %955 = vmatpush.xpose.msra.mxu0 0.0
        %956 = vmatpush.xpose.msra.mxu0 0.0
        %957 = vmatpush.xpose.msra.mxu0 0.0
        %958 = vmatpush.xpose.msra.mxu0 0.0
        %959 = vmatpush.xpose.msra.mxu0 %v942
        %960 = vmatmul.f32.gmra.mxu0 %v940
        %v961 = vpop.f32.mrf.mxu0
        %v962 = vadd.f32 0.0, %v961
        %963 = vdwg.mxu0
        %v964 = vmul.f32 %v962, 0.35355338
        %v965 = vadd.f32 %v964, %v692
        %v966 = vsel %vm665, %v965, -inf
        %967 = vmax.xlane.f32.xlu0 %v966
        %v968 = vpop.xlane.xlu0 %967
        %v969 = vsub.f32 %v965, %v968
        %v970 = vmul.f32 %v969, 1.442695
        %v971 = vpow.pop %v970
        %v972 = vsel %vm665, %v971, 0.0
        %973 = vadd.xlane.f32.xlu0 %v972
        %v974 = vpop.xlane.xlu0 %973
        %v975 = vrcp.pop %v974
        %v976 = vmul.f32 %v971, %v975
        %977 = vrot.lane.b32.xlu0 %v656, 40
        %v978 = vpop.permute.xlu0 %977
        %v981 = vsel %vm665, %v976, 0
        %983 = vmatpush.msra.mxu0 0.0
        %984 = vmatpush.msra.mxu0 0.0
        %985 = vmatpush.msra.mxu0 0.0
        %986 = vmatpush.msra.mxu0 0.0
        %987 = vmatpush.msra.mxu0 0.0
        %988 = vmatpush.msra.mxu0 0.0
        %989 = vmatpush.msra.mxu0 0.0
        %990 = vmatpush.msra.mxu0 0.0
        %991 = vmatpush.msra.mxu0 0.0
        %992 = vmatpush.msra.mxu0 0.0
        %993 = vmatpush.msra.mxu0 0.0
        %994 = vmatpush.msra.mxu0 0.0
        %995 = vmatpush.msra.mxu0 0.0
        %996 = vmatpush.msra.mxu0 0.0
        %997 = vmatpush.msra.mxu0 0.0
        %998 = vmatpush.msra.mxu0 %v978
        %999 = vmatmul.f32.gmra.mxu0 %v981
        %v1000 = vpop.f32.mrf.mxu0
        %v1001 = vadd.f32 0.0, %v1000
        %1002 = vdwg.mxu0
        %v1004 = vsel %vm665, %v1001, 0
        %1006 = vmatpush.msra.mxu0 0.0
        %1007 = vmatpush.msra.mxu0 0.0
        %1008 = vmatpush.msra.mxu0 0.0
        %1009 = vmatpush.msra.mxu0 0.0
        %1010 = vmatpush.msra.mxu0 0.0
        %1011 = vmatpush.msra.mxu0 0.0
        %1012 = vmatpush.msra.mxu0 0.0
        %1013 = vmatpush.msra.mxu0 0.0
        %1014 = vmatpush.msra.mxu0 0.0
        %1015 = vmatpush.msra.mxu0 0.0
        %1016 = vmatpush.msra.mxu0 0.0
        %1017 = vmatpush.msra.mxu0 0.0
        %1018 = vmatpush.msra.mxu0 0.0
        %1019 = vmatpush.msra.mxu0 0.0
        %1020 = vmatpush.msra.mxu0 0.0
        %1021 = vmatpush.msra.mxu0 %v661
        %1022 = vmatmul.f32.gmra.mxu0 %v1004
        %v1023 = vpop.f32.mrf.mxu0
        %v1024 = vadd.f32 0.0, %v1023
        %1025 = vdwg.mxu0
        %v1026 = vadd.f32 %v935, %v1024
        %v1027 = vld [vmem:[%s5] sm:$0x1]
        %v1029 = vperm.slane %v1027, 0
        %v1031 = vadd.f32 %v1026, %v1029
        %v1032 = vadd.f32 %v1031, %v625
        %v1033 = vld [vmem:[%s6] sm:$0x1]
        %v1034 = vld [vmem:[%s7] sm:$0x1]
        %v1035 = vsel %vm588, %v1032, 0.0
        %1036 = vadd.xlane.f32.xlu0 %v1035
        %v1037 = vpop.xlane.xlu0 %1036
        %v1038 = vmul.f32 %v1037, %v598
        %v1039 = vsub.f32 %v1032, %v1038
        %v1040 = vmul.f32 %v1039, %v1039
        %v1041 = vsel %vm588, %v1040, 0.0
        %1042 = vadd.xlane.f32.xlu0 %v1041
        %v1043 = vpop.xlane.xlu0 %1042
        %v1044 = vmul.f32 %v1043, %v598
        %v1045 = vadd.f32 %v1044, 1e-12
        %v1046 = vrsqrt.pop %v1045
        %v1047 = vmul.f32 %v1046, %v1045
        %v1048 = vmul.f32 %v1047, %v1046
        %v1049 = vmul.f32 0.5, %v1048
        %v1050 = vsub.f32 1.5, %v1049
        %v1051 = vmul.f32 %v1046, %v1050
        %vm1052 = vweird.f32 %v1045
        %vm1053 = vweird.f32 %v1046
        %vm1054 = vmor %vm1052, %vm1053
        %v1055 = vsel %vm1054, %v1046, %v1051
        %v1056 = vmul.f32 %v1039, %v1055
        %v1058 = vperm.slane %v1033, 0
        %v1060 = vmul.f32 %v1056, %v1058
        %v1062 = vperm.slane %v1034, 0
        %v1064 = vadd.f32 %v1060, %v1062
        %v1065 = vld [vmem:[%s8] sm:$0xff]
        %v1066 = vld [vmem:[%s8 + $0x8] sm:$0xff]
        %v1067 = vld [vmem:[%s8 + $0x10] sm:$0xff]
        %v1068 = vld [vmem:[%s8 + $0x18] sm:$0xff]
        %v1069 = vld [vmem:[%s9] sm:$0x1]
        %v1071 = vperm.slane %v1069, 0
        %v1074 = vsel %vm588, %v1064, 0
        %1076 = vmatpush.msra.mxu0 0.0
        %1077 = vmatpush.msra.mxu0 0.0
        %1078 = vmatpush.msra.mxu0 0.0
        %1079 = vmatpush.msra.mxu0 0.0
        %1080 = vmatpush.msra.mxu0 0.0
        %1081 = vmatpush.msra.mxu0 0.0
        %1082 = vmatpush.msra.mxu0 0.0
        %1083 = vmatpush.msra.mxu0 0.0
        %1084 = vmatpush.msra.mxu0 0.0
        %1085 = vmatpush.msra.mxu0 0.0
        %1086 = vmatpush.msra.mxu0 0.0
        %1087 = vmatpush.msra.mxu0 0.0
        %1088 = vmatpush.msra.mxu0 %v1068
        %1089 = vmatpush.msra.mxu0 %v1067
        %1090 = vmatpush.msra.mxu0 %v1066
        %1091 = vmatpush.msra.mxu0 %v1065
        %1092 = vmatmul.f32.gmra.mxu0 %v1074
        %v1093 = vpop.f32.mrf.mxu0
        %v1094 = vadd.f32 %v1071, %v1093
        %1095 = vdwg.mxu0
        %v1096 = vmul.f32 %v1094, 0.5
        %v1097 = vmul.f32 %v1094, 0.044715
        %v1098 = vmul.f32 %v1097, %v1094
        %v1099 = vmul.f32 %v1098, %v1094
        %v1100 = vadd.f32 %v1094, %v1099
        %v1101 = vmul.f32 %v1100, 0.7978846
        %v1102 = vtanh.pop %v1101
        %v1103 = vadd.f32 %v1102, 1.0
        %v1104 = vmul.f32 %v1096, %v1103
        %v1105 = vld [vmem:[%s10] sm:$0xff]
        %v1106 = vld [vmem:[%s10 + $0x8] sm:$0xff]
        %v1107 = vld [vmem:[%s10 + $0x10] sm:$0xff]
        %v1108 = vld [vmem:[%s10 + $0x18] sm:$0xff]
        %v1109 = vld [vmem:[%s10 + $0x20] sm:$0xff]
        %v1110 = vld [vmem:[%s10 + $0x28] sm:$0xff]
        %v1111 = vld [vmem:[%s10 + $0x30] sm:$0xff]
        %v1112 = vld [vmem:[%s10 + $0x38] sm:$0xff]
        %v1113 = vld [vmem:[%s11] sm:$0x1]
        %v1115 = vperm.slane %v1113, 0
        %vm1117 = vcmask 523264
        %v1119 = vsel %vm1117, %v1104, 0
        %1121 = vmatpush.msra.mxu0 0.0
        %1122 = vmatpush.msra.mxu0 0.0
        %1123 = vmatpush.msra.mxu0 0.0
        %1124 = vmatpush.msra.mxu0 0.0
        %1125 = vmatpush.msra.mxu0 0.0
        %1126 = vmatpush.msra.mxu0 0.0
        %1127 = vmatpush.msra.mxu0 0.0
        %1128 = vmatpush.msra.mxu0 0.0
        %1129 = vmatpush.msra.mxu0 %v1112
        %1130 = vmatpush.msra.mxu0 %v1111
        %1131 = vmatpush.msra.mxu0 %v1110
        %1132 = vmatpush.msra.mxu0 %v1109
        %1133 = vmatpush.msra.mxu0 %v1108
        %1134 = vmatpush.msra.mxu0 %v1107
        %1135 = vmatpush.msra.mxu0 %v1106
        %1136 = vmatpush.msra.mxu0 %v1105
        %1137 = vmatmul.f32.gmra.mxu0 %v1119
        %v1138 = vpop.f32.mrf.mxu0
        %v1139 = vadd.f32 %v1115, %v1138
        %1140 = vdwg.mxu0
        %v1141 = vadd.f32 %v1139, %v1064
        %v1142 = vld [vmem:[%s12] sm:$0x1]
        %v1143 = vld [vmem:[%s13] sm:$0x1]
        %v1144 = vsel %vm588, %v1141, 0.0
        %1145 = vadd.xlane.f32.xlu0 %v1144
        %v1146 = vpop.xlane.xlu0 %1145
        %v1147 = vmul.f32 %v1146, %v598
        %v1148 = vsub.f32 %v1141, %v1147
        %v1149 = vmul.f32 %v1148, %v1148
        %v1150 = vsel %vm588, %v1149, 0.0
        %1151 = vadd.xlane.f32.xlu0 %v1150
        %v1152 = vpop.xlane.xlu0 %1151
        %v1153 = vmul.f32 %v1152, %v598
        %v1154 = vadd.f32 %v1153, 1e-12
        %v1155 = vrsqrt.pop %v1154
        %v1156 = vmul.f32 %v1155, %v1154
        %v1157 = vmul.f32 %v1156, %v1155
        %v1158 = vmul.f32 0.5, %v1157
        %v1159 = vsub.f32 1.5, %v1158
        %v1160 = vmul.f32 %v1155, %v1159
        %vm1161 = vweird.f32 %v1154
        %vm1162 = vweird.f32 %v1155
        %vm1163 = vmor %vm1161, %vm1162
        %v1164 = vsel %vm1163, %v1155, %v1160
        %v1165 = vmul.f32 %v1148, %v1164
        %v1167 = vperm.slane %v1142, 0
        %v1169 = vmul.f32 %v1165, %v1167
        %v1171 = vperm.slane %v1143, 0
        %v1173 = vadd.f32 %v1169, %v1171
        %s1174 = scalar_lea.vmem %s2, 32
        %v1175 = vld [vmem:[%s1174] sm:$0xff]
        %v1176 = vld [vmem:[%s1174 + $0x8] sm:$0xff]
        %v1177 = vld [vmem:[%s1174 + $0x10] sm:$0xff]
        %v1178 = vld [vmem:[%s1174 + $0x18] sm:$0xff]
        %s1179 = scalar_lea.vmem %s3, 1
        %v1180 = vld [vmem:[%s1179] sm:$0x1]
        %v1182 = vperm.slane %v1180, 0
        %v1185 = vsel %vm588, %v1173, 0
        %1187 = vmatpush.msra.mxu0 0.0
        %1188 = vmatpush.msra.mxu0 0.0
        %1189 = vmatpush.msra.mxu0 0.0
        %1190 = vmatpush.msra.mxu0 0.0
        %1191 = vmatpush.msra.mxu0 0.0
        %1192 = vmatpush.msra.mxu0 0.0
        %1193 = vmatpush.msra.mxu0 0.0
        %1194 = vmatpush.msra.mxu0 0.0
        %1195 = vmatpush.msra.mxu0 0.0
        %1196 = vmatpush.msra.mxu0 0.0
        %1197 = vmatpush.msra.mxu0 0.0
        %1198 = vmatpush.msra.mxu0 0.0
        %1199 = vmatpush.msra.mxu0 %v1178
        %1200 = vmatpush.msra.mxu0 %v1177
        %1201 = vmatpush.msra.mxu0 %v1176
        %1202 = vmatpush.msra.mxu0 %v1175
        %1203 = vmatmul.f32.gmra.mxu0 %v1185
        %v1204 = vpop.f32.mrf.mxu0
        %v1205 = vadd.f32 %v1182, %v1204
        %1206 = vdwg.mxu0
        %s1207 = scalar_lea.vmem %s4, 32
        %v1208 = vld [vmem:[%s1207] sm:$0xff]
        %v1209 = vld [vmem:[%s1207 + $0x8] sm:$0xff]
        %v1210 = vld [vmem:[%s1207 + $0x10] sm:$0xff]
        %v1211 = vld [vmem:[%s1207 + $0x18] sm:$0xff]
        %1213 = vrot.lane.b32.xlu0 %v1205, 96
        %v1214 = vpop.permute.xlu0 %1213
        %v1215 = vsel %vm665, %v1205, 0
        %v1217 = vsel %vm665, %v1214, 0
        %1219 = vmatpush.xpose.msra.mxu0 0.0
        %1220 = vmatpush.xpose.msra.mxu0 0.0
        %1221 = vmatpush.xpose.msra.mxu0 0.0
        %1222 = vmatpush.xpose.msra.mxu0 0.0
        %1223 = vmatpush.xpose.msra.mxu0 0.0
        %1224 = vmatpush.xpose.msra.mxu0 0.0
        %1225 = vmatpush.xpose.msra.mxu0 0.0
        %1226 = vmatpush.xpose.msra.mxu0 0.0
        %1227 = vmatpush.xpose.msra.mxu0 0.0
        %1228 = vmatpush.xpose.msra.mxu0 0.0
        %1229 = vmatpush.xpose.msra.mxu0 0.0
        %1230 = vmatpush.xpose.msra.mxu0 0.0
        %1231 = vmatpush.xpose.msra.mxu0 0.0
        %1232 = vmatpush.xpose.msra.mxu0 0.0
        %1233 = vmatpush.xpose.msra.mxu0 0.0
        %1234 = vmatpush.xpose.msra.mxu0 %v1217
        %1235 = vmatmul.f32.gmra.mxu0 %v1215
        %v1236 = vpop.f32.mrf.mxu0
        %v1237 = vadd.f32 0.0, %v1236
        %1238 = vdwg.mxu0
        %v1239 = vmul.f32 %v1237, 0.35355338
        %v1240 = vadd.f32 %v1239, %v692
        %v1241 = vsel %vm665, %v1240, -inf
        %1242 = vmax.xlane.f32.xlu0 %v1241
        %v1243 = vpop.xlane.xlu0 %1242
        %v1244 = vsub.f32 %v1240, %v1243
        %v1245 = vmul.f32 %v1244, 1.442695
        %v1246 = vpow.pop %v1245
        %v1247 = vsel %vm665, %v1246, 0.0
        %1248 = vadd.xlane.f32.xlu0 %v1247
        %v1249 = vpop.xlane.xlu0 %1248
        %v1250 = vrcp.pop %v1249
        %v1251 = vmul.f32 %v1246, %v1250
        %1252 = vrot.lane.b32.xlu0 %v1205, 64
        %v1253 = vpop.permute.xlu0 %1252
        %v1256 = vsel %vm665, %v1251, 0
        %1258 = vmatpush.msra.mxu0 0.0
        %1259 = vmatpush.msra.mxu0 0.0
        %1260 = vmatpush.msra.mxu0 0.0
        %1261 = vmatpush.msra.mxu0 0.0
        %1262 = vmatpush.msra.mxu0 0.0
        %1263 = vmatpush.msra.mxu0 0.0
        %1264 = vmatpush.msra.mxu0 0.0
        %1265 = vmatpush.msra.mxu0 0.0
        %1266 = vmatpush.msra.mxu0 0.0
        %1267 = vmatpush.msra.mxu0 0.0
        %1268 = vmatpush.msra.mxu0 0.0
        %1269 = vmatpush.msra.mxu0 0.0
        %1270 = vmatpush.msra.mxu0 0.0
        %1271 = vmatpush.msra.mxu0 0.0
        %1272 = vmatpush.msra.mxu0 0.0
        %1273 = vmatpush.msra.mxu0 %v1253
        %1274 = vmatmul.f32.gmra.mxu0 %v1256
        %v1275 = vpop.f32.mrf.mxu0
        %v1276 = vadd.f32 0.0, %v1275
        %1277 = vdwg.mxu0
        %1278 = vrot.lane.b32.xlu0 %v1205, 120
        %v1279 = vpop.permute.xlu0 %1278
        %1280 = vrot.lane.b32.xlu0 %v1205, 88
        %v1281 = vpop.permute.xlu0 %1280
        %v1282 = vsel %vm665, %v1279, 0
        %v1284 = vsel %vm665, %v1281, 0
        %1286 = vmatpush.xpose.msra.mxu0 0.0
        %1287 = vmatpush.xpose.msra.mxu0 0.0
        %1288 = vmatpush.xpose.msra.mxu0 0.0
        %1289 = vmatpush.xpose.msra.mxu0 0.0
        %1290 = vmatpush.xpose.msra.mxu0 0.0
        %1291 = vmatpush.xpose.msra.mxu0 0.0
        %1292 = vmatpush.xpose.msra.mxu0 0.0
        %1293 = vmatpush.xpose.msra.mxu0 0.0
        %1294 = vmatpush.xpose.msra.mxu0 0.0
        %1295 = vmatpush.xpose.msra.mxu0 0.0
        %1296 = vmatpush.xpose.msra.mxu0 0.0
        %1297 = vmatpush.xpose.msra.mxu0 0.0
        %1298 = vmatpush.xpose.msra.mxu0 0.0
        %1299 = vmatpush.xpose.msra.mxu0 0.0
        %1300 = vmatpush.xpose.msra.mxu0 0.0
        %1301 = vmatpush.xpose.msra.mxu0 %v1284
        %1302 = vmatmul.f32.gmra.mxu0 %v1282
        %v1303 = vpop.f32.mrf.mxu0
        %v1304 = vadd.f32 0.0, %v1303
        %1305 = vdwg.mxu0
        %v1306 = vmul.f32 %v1304, 0.35355338
        %v1307 = vadd.f32 %v1306, %v692
        %v1308 = vsel %vm665, %v1307, -inf
        %1309 = vmax.xlane.f32.xlu0 %v1308
        %v1310 = vpop.xlane.xlu0 %1309
        %v1311 = vsub.f32 %v1307, %v1310
        %v1312 = vmul.f32 %v1311, 1.442695
        %v1313 = vpow.pop %v1312
        %v1314 = vsel %vm665, %v1313, 0.0
        %1315 = vadd.xlane.f32.xlu0 %v1314
        %v1316 = vpop.xlane.xlu0 %1315
        %v1317 = vrcp.pop %v1316
        %v1318 = vmul.f32 %v1313, %v1317
        %1319 = vrot.lane.b32.xlu0 %v1205, 56
        %v1320 = vpop.permute.xlu0 %1319
        %v1323 = vsel %vm665, %v1318, 0
        %1325 = vmatpush.msra.mxu0 0.0
        %1326 = vmatpush.msra.mxu0 0.0
        %1327 = vmatpush.msra.mxu0 0.0
        %1328 = vmatpush.msra.mxu0 0.0
        %1329 = vmatpush.msra.mxu0 0.0
        %1330 = vmatpush.msra.mxu0 0.0
        %1331 = vmatpush.msra.mxu0 0.0
        %1332 = vmatpush.msra.mxu0 0.0
        %1333 = vmatpush.msra.mxu0 0.0
        %1334 = vmatpush.msra.mxu0 0.0
        %1335 = vmatpush.msra.mxu0 0.0
        %1336 = vmatpush.msra.mxu0 0.0
        %1337 = vmatpush.msra.mxu0 0.0
        %1338 = vmatpush.msra.mxu0 0.0
        %1339 = vmatpush.msra.mxu0 0.0
        %1340 = vmatpush.msra.mxu0 %v1320
        %1341 = vmatmul.f32.gmra.mxu0 %v1323
        %v1342 = vpop.f32.mrf.mxu0
        %v1343 = vadd.f32 0.0, %v1342
        %1344 = vdwg.mxu0
        %v1346 = vsel %vm665, %v1343, 0
        %1348 = vmatpush.msra.mxu0 0.0
        %1349 = vmatpush.msra.mxu0 0.0
        %1350 = vmatpush.msra.mxu0 0.0
        %1351 = vmatpush.msra.mxu0 0.0
        %1352 = vmatpush.msra.mxu0 0.0
        %1353 = vmatpush.msra.mxu0 0.0
        %1354 = vmatpush.msra.mxu0 0.0
        %1355 = vmatpush.msra.mxu0 0.0
        %1356 = vmatpush.msra.mxu0 0.0
        %1357 = vmatpush.msra.mxu0 0.0
        %1358 = vmatpush.msra.mxu0 0.0
        %1359 = vmatpush.msra.mxu0 0.0
        %1360 = vmatpush.msra.mxu0 0.0
        %1361 = vmatpush.msra.mxu0 0.0
        %1362 = vmatpush.msra.mxu0 0.0
        %1363 = vmatpush.msra.mxu0 %v1209
        %1364 = vmatmul.f32.gmra.mxu0 %v1346
        %v1365 = vpop.f32.mrf.mxu0
        %v1366 = vadd.f32 0.0, %v1365
        %1367 = vdwg.mxu0
        %v1369 = vsel %vm665, %v1276, 0
        %1371 = vmatpush.msra.mxu0 0.0
        %1372 = vmatpush.msra.mxu0 0.0
        %1373 = vmatpush.msra.mxu0 0.0
        %1374 = vmatpush.msra.mxu0 0.0
        %1375 = vmatpush.msra.mxu0 0.0
        %1376 = vmatpush.msra.mxu0 0.0
        %1377 = vmatpush.msra.mxu0 0.0
        %1378 = vmatpush.msra.mxu0 0.0
        %1379 = vmatpush.msra.mxu0 0.0
        %1380 = vmatpush.msra.mxu0 0.0
        %1381 = vmatpush.msra.mxu0 0.0
        %1382 = vmatpush.msra.mxu0 0.0
        %1383 = vmatpush.msra.mxu0 0.0
        %1384 = vmatpush.msra.mxu0 0.0
        %1385 = vmatpush.msra.mxu0 0.0
        %1386 = vmatpush.msra.mxu0 %v1208
        %1387 = vmatmul.f32.gmra.mxu0 %v1369
        %v1388 = vpop.f32.mrf.mxu0
        %v1389 = vadd.f32 %v1366, %v1388
        %1390 = vdwg.mxu0
        %1391 = vrot.lane.b32.xlu0 %v1205, 112
        %v1392 = vpop.permute.xlu0 %1391
        %1393 = vrot.lane.b32.xlu0 %v1205, 80
        %v1394 = vpop.permute.xlu0 %1393
        %v1395 = vsel %vm665, %v1392, 0
        %v1397 = vsel %vm665, %v1394, 0
        %1399 = vmatpush.xpose.msra.mxu0 0.0
        %1400 = vmatpush.xpose.msra.mxu0 0.0
        %1401 = vmatpush.xpose.msra.mxu0 0.0
        %1402 = vmatpush.xpose.msra.mxu0 0.0
        %1403 = vmatpush.xpose.msra.mxu0 0.0
        %1404 = vmatpush.xpose.msra.mxu0 0.0
        %1405 = vmatpush.xpose.msra.mxu0 0.0
        %1406 = vmatpush.xpose.msra.mxu0 0.0
        %1407 = vmatpush.xpose.msra.mxu0 0.0
        %1408 = vmatpush.xpose.msra.mxu0 0.0
        %1409 = vmatpush.xpose.msra.mxu0 0.0
        %1410 = vmatpush.xpose.msra.mxu0 0.0
        %1411 = vmatpush.xpose.msra.mxu0 0.0
        %1412 = vmatpush.xpose.msra.mxu0 0.0
        %1413 = vmatpush.xpose.msra.mxu0 0.0
        %1414 = vmatpush.xpose.msra.mxu0 %v1397
        %1415 = vmatmul.f32.gmra.mxu0 %v1395
        %v1416 = vpop.f32.mrf.mxu0
        %v1417 = vadd.f32 0.0, %v1416
        %1418 = vdwg.mxu0
        %v1419 = vmul.f32 %v1417, 0.35355338
        %v1420 = vadd.f32 %v1419, %v692
        %v1421 = vsel %vm665, %v1420, -inf
        %1422 = vmax.xlane.f32.xlu0 %v1421
        %v1423 = vpop.xlane.xlu0 %1422
        %v1424 = vsub.f32 %v1420, %v1423
        %v1425 = vmul.f32 %v1424, 1.442695
        %v1426 = vpow.pop %v1425
        %v1427 = vsel %vm665, %v1426, 0.0
        %1428 = vadd.xlane.f32.xlu0 %v1427
        %v1429 = vpop.xlane.xlu0 %1428
        %v1430 = vrcp.pop %v1429
        %v1431 = vmul.f32 %v1426, %v1430
        %1432 = vrot.lane.b32.xlu0 %v1205, 48
        %v1433 = vpop.permute.xlu0 %1432
        %v1436 = vsel %vm665, %v1431, 0
        %1438 = vmatpush.msra.mxu0 0.0
        %1439 = vmatpush.msra.mxu0 0.0
        %1440 = vmatpush.msra.mxu0 0.0
        %1441 = vmatpush.msra.mxu0 0.0
        %1442 = vmatpush.msra.mxu0 0.0
        %1443 = vmatpush.msra.mxu0 0.0
        %1444 = vmatpush.msra.mxu0 0.0
        %1445 = vmatpush.msra.mxu0 0.0
        %1446 = vmatpush.msra.mxu0 0.0
        %1447 = vmatpush.msra.mxu0 0.0
        %1448 = vmatpush.msra.mxu0 0.0
        %1449 = vmatpush.msra.mxu0 0.0
        %1450 = vmatpush.msra.mxu0 0.0
        %1451 = vmatpush.msra.mxu0 0.0
        %1452 = vmatpush.msra.mxu0 0.0
        %1453 = vmatpush.msra.mxu0 %v1433
        %1454 = vmatmul.f32.gmra.mxu0 %v1436
        %v1455 = vpop.f32.mrf.mxu0
        %v1456 = vadd.f32 0.0, %v1455
        %1457 = vdwg.mxu0
        %v1459 = vsel %vm665, %v1456, 0
        %1461 = vmatpush.msra.mxu0 0.0
        %1462 = vmatpush.msra.mxu0 0.0
        %1463 = vmatpush.msra.mxu0 0.0
        %1464 = vmatpush.msra.mxu0 0.0
        %1465 = vmatpush.msra.mxu0 0.0
        %1466 = vmatpush.msra.mxu0 0.0
        %1467 = vmatpush.msra.mxu0 0.0
        %1468 = vmatpush.msra.mxu0 0.0
        %1469 = vmatpush.msra.mxu0 0.0
        %1470 = vmatpush.msra.mxu0 0.0
        %1471 = vmatpush.msra.mxu0 0.0
        %1472 = vmatpush.msra.mxu0 0.0
        %1473 = vmatpush.msra.mxu0 0.0
        %1474 = vmatpush.msra.mxu0 0.0
        %1475 = vmatpush.msra.mxu0 0.0
        %1476 = vmatpush.msra.mxu0 %v1210
        %1477 = vmatmul.f32.gmra.mxu0 %v1459
        %v1478 = vpop.f32.mrf.mxu0
        %v1479 = vadd.f32 0.0, %v1478
        %1480 = vdwg.mxu0
        %v1481 = vadd.f32 %v1389, %v1479
        %1482 = vrot.lane.b32.xlu0 %v1205, 104
        %v1483 = vpop.permute.xlu0 %1482
        %1484 = vrot.lane.b32.xlu0 %v1205, 72
        %v1485 = vpop.permute.xlu0 %1484
        %v1486 = vsel %vm665, %v1483, 0
        %v1488 = vsel %vm665, %v1485, 0
        %1490 = vmatpush.xpose.msra.mxu0 0.0
        %1491 = vmatpush.xpose.msra.mxu0 0.0
        %1492 = vmatpush.xpose.msra.mxu0 0.0
        %1493 = vmatpush.xpose.msra.mxu0 0.0
        %1494 = vmatpush.xpose.msra.mxu0 0.0
        %1495 = vmatpush.xpose.msra.mxu0 0.0
        %1496 = vmatpush.xpose.msra.mxu0 0.0
        %1497 = vmatpush.xpose.msra.mxu0 0.0
        %1498 = vmatpush.xpose.msra.mxu0 0.0
        %1499 = vmatpush.xpose.msra.mxu0 0.0
        %1500 = vmatpush.xpose.msra.mxu0 0.0
        %1501 = vmatpush.xpose.msra.mxu0 0.0
        %1502 = vmatpush.xpose.msra.mxu0 0.0
        %1503 = vmatpush.xpose.msra.mxu0 0.0
        %1504 = vmatpush.xpose.msra.mxu0 0.0
        %1505 = vmatpush.xpose.msra.mxu0 %v1488
        %1506 = vmatmul.f32.gmra.mxu0 %v1486
        %v1507 = vpop.f32.mrf.mxu0
        %v1508 = vadd.f32 0.0, %v1507
        %1509 = vdwg.mxu0
        %v1510 = vmul.f32 %v1508, 0.35355338
        %v1511 = vadd.f32 %v1510, %v692
        %v1512 = vsel %vm665, %v1511, -inf
        %1513 = vmax.xlane.f32.xlu0 %v1512
        %v1514 = vpop.xlane.xlu0 %1513
        %v1515 = vsub.f32 %v1511, %v1514
        %v1516 = vmul.f32 %v1515, 1.442695
        %v1517 = vpow.pop %v1516
        %v1518 = vsel %vm665, %v1517, 0.0
        %1519 = vadd.xlane.f32.xlu0 %v1518
        %v1520 = vpop.xlane.xlu0 %1519
        %v1521 = vrcp.pop %v1520
        %v1522 = vmul.f32 %v1517, %v1521
        %1523 = vrot.lane.b32.xlu0 %v1205, 40
        %v1524 = vpop.permute.xlu0 %1523
        %v1527 = vsel %vm665, %v1522, 0
        %1529 = vmatpush.msra.mxu0 0.0
        %1530 = vmatpush.msra.mxu0 0.0
        %1531 = vmatpush.msra.mxu0 0.0
        %1532 = vmatpush.msra.mxu0 0.0
        %1533 = vmatpush.msra.mxu0 0.0
        %1534 = vmatpush.msra.mxu0 0.0
        %1535 = vmatpush.msra.mxu0 0.0
        %1536 = vmatpush.msra.mxu0 0.0
        %1537 = vmatpush.msra.mxu0 0.0
        %1538 = vmatpush.msra.mxu0 0.0
        %1539 = vmatpush.msra.mxu0 0.0
        %1540 = vmatpush.msra.mxu0 0.0
        %1541 = vmatpush.msra.mxu0 0.0
        %1542 = vmatpush.msra.mxu0 0.0
        %1543 = vmatpush.msra.mxu0 0.0
        %1544 = vmatpush.msra.mxu0 %v1524
        %1545 = vmatmul.f32.gmra.mxu0 %v1527
        %v1546 = vpop.f32.mrf.mxu0
        %v1547 = vadd.f32 0.0, %v1546
        %1548 = vdwg.mxu0
        %v1550 = vsel %vm665, %v1547, 0
        %1552 = vmatpush.msra.mxu0 0.0
        %1553 = vmatpush.msra.mxu0 0.0
        %1554 = vmatpush.msra.mxu0 0.0
        %1555 = vmatpush.msra.mxu0 0.0
        %1556 = vmatpush.msra.mxu0 0.0
        %1557 = vmatpush.msra.mxu0 0.0
        %1558 = vmatpush.msra.mxu0 0.0
        %1559 = vmatpush.msra.mxu0 0.0
        %1560 = vmatpush.msra.mxu0 0.0
        %1561 = vmatpush.msra.mxu0 0.0
        %1562 = vmatpush.msra.mxu0 0.0
        %1563 = vmatpush.msra.mxu0 0.0
        %1564 = vmatpush.msra.mxu0 0.0
        %1565 = vmatpush.msra.mxu0 0.0
        %1566 = vmatpush.msra.mxu0 0.0
        %1567 = vmatpush.msra.mxu0 %v1211
        %1568 = vmatmul.f32.gmra.mxu0 %v1550
        %v1569 = vpop.f32.mrf.mxu0
        %v1570 = vadd.f32 0.0, %v1569
        %1571 = vdwg.mxu0
        %v1572 = vadd.f32 %v1481, %v1570
        %s1573 = scalar_lea.vmem %s5, 1
        %v1574 = vld [vmem:[%s1573] sm:$0x1]
        %v1576 = vperm.slane %v1574, 0
        %v1578 = vadd.f32 %v1572, %v1576
        %v1579 = vadd.f32 %v1578, %v1173
        %s1580 = scalar_lea.vmem %s6, 1
        %v1581 = vld [vmem:[%s1580] sm:$0x1]
        %s1582 = scalar_lea.vmem %s7, 1
        %v1583 = vld [vmem:[%s1582] sm:$0x1]
        %v1584 = vsel %vm588, %v1579, 0.0
        %1585 = vadd.xlane.f32.xlu0 %v1584
        %v1586 = vpop.xlane.xlu0 %1585
        %v1587 = vmul.f32 %v1586, %v598
        %v1588 = vsub.f32 %v1579, %v1587
        %v1589 = vmul.f32 %v1588, %v1588
        %v1590 = vsel %vm588, %v1589, 0.0
        %1591 = vadd.xlane.f32.xlu0 %v1590
        %v1592 = vpop.xlane.xlu0 %1591
        %v1593 = vmul.f32 %v1592, %v598
        %v1594 = vadd.f32 %v1593, 1e-12
        %v1595 = vrsqrt.pop %v1594
        %v1596 = vmul.f32 %v1595, %v1594
        %v1597 = vmul.f32 %v1596, %v1595
        %v1598 = vmul.f32 0.5, %v1597
        %v1599 = vsub.f32 1.5, %v1598
        %v1600 = vmul.f32 %v1595, %v1599
        %vm1601 = vweird.f32 %v1594
        %vm1602 = vweird.f32 %v1595
        %vm1603 = vmor %vm1601, %vm1602
        %v1604 = vsel %vm1603, %v1595, %v1600
        %v1605 = vmul.f32 %v1588, %v1604
        %v1607 = vperm.slane %v1581, 0
        %v1609 = vmul.f32 %v1605, %v1607
        %v1611 = vperm.slane %v1583, 0
        %v1613 = vadd.f32 %v1609, %v1611
        %s1614 = scalar_lea.vmem %s8, 32
        %v1615 = vld [vmem:[%s1614] sm:$0xff]
        %v1616 = vld [vmem:[%s1614 + $0x8] sm:$0xff]
        %v1617 = vld [vmem:[%s1614 + $0x10] sm:$0xff]
        %v1618 = vld [vmem:[%s1614 + $0x18] sm:$0xff]
        %s1619 = scalar_lea.vmem %s9, 1
        %v1620 = vld [vmem:[%s1619] sm:$0x1]
        %v1622 = vperm.slane %v1620, 0
        %v1625 = vsel %vm588, %v1613, 0
        %1627 = vmatpush.msra.mxu0 0.0
        %1628 = vmatpush.msra.mxu0 0.0
        %1629 = vmatpush.msra.mxu0 0.0
        %1630 = vmatpush.msra.mxu0 0.0
        %1631 = vmatpush.msra.mxu0 0.0
        %1632 = vmatpush.msra.mxu0 0.0
        %1633 = vmatpush.msra.mxu0 0.0
        %1634 = vmatpush.msra.mxu0 0.0
        %1635 = vmatpush.msra.mxu0 0.0
        %1636 = vmatpush.msra.mxu0 0.0
        %1637 = vmatpush.msra.mxu0 0.0
        %1638 = vmatpush.msra.mxu0 0.0
        %1639 = vmatpush.msra.mxu0 %v1618
        %1640 = vmatpush.msra.mxu0 %v1617
        %1641 = vmatpush.msra.mxu0 %v1616
        %1642 = vmatpush.msra.mxu0 %v1615
        %1643 = vmatmul.f32.gmra.mxu0 %v1625
        %v1644 = vpop.f32.mrf.mxu0
        %v1645 = vadd.f32 %v1622, %v1644
        %1646 = vdwg.mxu0
        %v1647 = vmul.f32 %v1645, 0.5
        %v1648 = vmul.f32 %v1645, 0.044715
        %v1649 = vmul.f32 %v1648, %v1645
        %v1650 = vmul.f32 %v1649, %v1645
        %v1651 = vadd.f32 %v1645, %v1650
        %v1652 = vmul.f32 %v1651, 0.7978846
        %v1653 = vtanh.pop %v1652
        %v1654 = vadd.f32 %v1653, 1.0
        %v1655 = vmul.f32 %v1647, %v1654
        %s1656 = scalar_lea.vmem %s10, 64
        %v1657 = vld [vmem:[%s1656] sm:$0xff]
        %v1658 = vld [vmem:[%s1656 + $0x8] sm:$0xff]
        %v1659 = vld [vmem:[%s1656 + $0x10] sm:$0xff]
        %v1660 = vld [vmem:[%s1656 + $0x18] sm:$0xff]
        %v1661 = vld [vmem:[%s1656 + $0x20] sm:$0xff]
        %v1662 = vld [vmem:[%s1656 + $0x28] sm:$0xff]
        %v1663 = vld [vmem:[%s1656 + $0x30] sm:$0xff]
        %v1664 = vld [vmem:[%s1656 + $0x38] sm:$0xff]
        %s1665 = scalar_lea.vmem %s11, 1
        %v1666 = vld [vmem:[%s1665] sm:$0x1]
        %v1668 = vperm.slane %v1666, 0
        %v1671 = vsel %vm1117, %v1655, 0
        %1673 = vmatpush.msra.mxu0 0.0
        %1674 = vmatpush.msra.mxu0 0.0
        %1675 = vmatpush.msra.mxu0 0.0
        %1676 = vmatpush.msra.mxu0 0.0
        %1677 = vmatpush.msra.mxu0 0.0
        %1678 = vmatpush.msra.mxu0 0.0
        %1679 = vmatpush.msra.mxu0 0.0
        %1680 = vmatpush.msra.mxu0 0.0
        %1681 = vmatpush.msra.mxu0 %v1664
        %1682 = vmatpush.msra.mxu0 %v1663
        %1683 = vmatpush.msra.mxu0 %v1662
        %1684 = vmatpush.msra.mxu0 %v1661
        %1685 = vmatpush.msra.mxu0 %v1660
        %1686 = vmatpush.msra.mxu0 %v1659
        %1687 = vmatpush.msra.mxu0 %v1658
        %1688 = vmatpush.msra.mxu0 %v1657
        %1689 = vmatmul.f32.gmra.mxu0 %v1671
        %v1690 = vpop.f32.mrf.mxu0
        %v1691 = vadd.f32 %v1668, %v1690
        %1692 = vdwg.mxu0
        %v1693 = vadd.f32 %v1691, %v1613
        %s1694 = scalar_lea.vmem %s12, 1
        %v1695 = vld [vmem:[%s1694] sm:$0x1]
        %s1696 = scalar_lea.vmem %s13, 1
        %v1697 = vld [vmem:[%s1696] sm:$0x1]
        %v1698 = vsel %vm588, %v1693, 0.0
        %1699 = vadd.xlane.f32.xlu0 %v1698
        %v1700 = vpop.xlane.xlu0 %1699
        %v1701 = vmul.f32 %v1700, %v598
        %v1702 = vsub.f32 %v1693, %v1701
        %v1703 = vmul.f32 %v1702, %v1702
        %v1704 = vsel %vm588, %v1703, 0.0
        %1705 = vadd.xlane.f32.xlu0 %v1704
        %v1706 = vpop.xlane.xlu0 %1705
        %v1707 = vmul.f32 %v1706, %v598
        %v1708 = vadd.f32 %v1707, 1e-12
        %v1709 = vrsqrt.pop %v1708
        %v1710 = vmul.f32 %v1709, %v1708
        %v1711 = vmul.f32 %v1710, %v1709
        %v1712 = vmul.f32 0.5, %v1711
        %v1713 = vsub.f32 1.5, %v1712
        %v1714 = vmul.f32 %v1709, %v1713
        %vm1715 = vweird.f32 %v1708
        %vm1716 = vweird.f32 %v1709
        %vm1717 = vmor %vm1715, %vm1716
        %v1718 = vsel %vm1717, %v1709, %v1714
        %v1719 = vmul.f32 %v1702, %v1718
        %v1721 = vperm.slane %v1695, 0
        %v1723 = vmul.f32 %v1719, %v1721
        %v1725 = vperm.slane %v1697, 0
        %v1727 = vadd.f32 %v1723, %v1725
        %v1728 = vld [vmem:[%s16] sm:$0xff]
        %v1729 = vld [vmem:[%s16 + $0x8] sm:$0xff]
        %v1730 = vld [vmem:[%s16 + $0x10] sm:$0xff]
        %v1731 = vld [vmem:[%s16 + $0x18] sm:$0xff]
        %v1732 = vld [vmem:[%s17] sm:$0x1]
        %v1734 = vperm.slane %v1732, 0
        %v1737 = vsel %vm588, %v1727, 0
        %1739 = vmatpush.msra.mxu0 0.0
        %1740 = vmatpush.msra.mxu0 0.0
        %1741 = vmatpush.msra.mxu0 0.0
        %1742 = vmatpush.msra.mxu0 0.0
        %1743 = vmatpush.msra.mxu0 0.0
        %1744 = vmatpush.msra.mxu0 0.0
        %1745 = vmatpush.msra.mxu0 0.0
        %1746 = vmatpush.msra.mxu0 0.0
        %1747 = vmatpush.msra.mxu0 0.0
        %1748 = vmatpush.msra.mxu0 0.0
        %1749 = vmatpush.msra.mxu0 0.0
        %1750 = vmatpush.msra.mxu0 0.0
        %1751 = vmatpush.msra.mxu0 %v1731
        %1752 = vmatpush.msra.mxu0 %v1730
        %1753 = vmatpush.msra.mxu0 %v1729
        %1754 = vmatpush.msra.mxu0 %v1728
        %1755 = vmatmul.f32.gmra.mxu0 %v1737
        %v1756 = vpop.f32.mrf.mxu0
        %v1757 = vadd.f32 %v1734, %v1756
        %1758 = vdwg.mxu0
        %v1759 = vsel %vm1117, %v1757, -inf
        %1760 = vmax.xlane.f32.xlu0 %v1759
        %v1761 = vpop.xlane.xlu0 %1760
        %v1762 = vsub.f32 %v1757, %v1761
        %v1763 = vmul.f32 %v1762, 1.442695
        %v1764 = vpow.pop %v1763
        %v1765 = vsel %vm1117, %v1764, 0.0
        %1766 = vadd.xlane.f32.xlu0 %v1765
        %v1767 = vpop.xlane.xlu0 %1766
        %v1768 = vrcp.pop %v1767
        %v1769 = vmul.f32 %v1764, %v1768
        %1770 = vst.msk [vmem:[%s577] sm:$0xff] %vm1117, %v1769
        %s1771 = sand.u32 %s428, 1
        %s1772 = scalar_lea.sflag [#allocation3], %s1771
        %s1773 = sand.u32 %s428, 1
        %s1774 = smul.addr %s1773, 8
        %s1775 = scalar_lea.vmem [#allocation2], %s1774
        // Predicated region
        $region93: #{_lambda_.1} parent=91 // pred_check
          %p1776 = pneg %p438
        $region94: #{_lambda_.1} parent=91 // pred_check_branch
          %1778 = sbr.rel (%p1776) target = $region96
        $region95: #{_lambda_.1} parent=91 // pred_region
          %1780 = vsyncadd %s1772, 0
          %s1781 = smul.addr %s32, 8
          %s1782 = scalar_lea.hbm %s18, %s1781
          %s1784 = sshll.u32 %s1775, 4
          %s1785 = int_to_ptr.vmem [resolvable:$true] %s1784
          %s1786 = sshll.u32 %s1782, 4
          %s1787 = int_to_ptr.hbm [resolvable:$true] %s1786
          %1789 = dma.vmem_to_hbm [thread:$0]  %s1785, 128, %s1787, %s1772
        $region96: #{_lambda_.1} parent=91 // pred_fallthru
          _
      $region92: #{_lambda_.1} parent=5 // pred_fallthru
        _
      %p1790 = scmp.le.s32.totalorder 2, %s27
      // Predicated region
      $region97: #{_lambda_.1} parent=5 // pred_check
        %p1791 = pneg %p1790
      $region98: #{_lambda_.1} parent=5 // pred_check_branch
        %1793 = sbr.rel (%p1791) target = $region100
      $region99: #{_lambda_.1} parent=5 // pred_region
        %s1794 = ssub.s32 %s27, 2
        // Predicated region
        $region101: #{_lambda_.1} parent=99 // pred_check
          %p1795 = pneg %p444
        $region102: #{_lambda_.1} parent=99 // pred_check_branch
          %1797 = sbr.rel (%p1795) target = $region104
        $region103: #{_lambda_.1} parent=99 // pred_region
          %s1798 = sand.u32 %s429, 1
          %s1799 = scalar_lea.sflag [#allocation3], %s1798
          %s1800 = sand.u32 %s429, 1
          %s1801 = smul.addr %s1800, 8
          %s1802 = scalar_lea.vmem [#allocation2], %s1801
          %1804 = dma.done %s1799, 128
        $region104: #{_lambda_.1} parent=99 // pred_fallthru
          _
      $region100: #{_lambda_.1} parent=5 // pred_fallthru
        _
    $region6: #{_lambda_.1} parent=1 // loop_footer
      %s31 = sadd.s32 1, %s27
    $region7: #{_lambda_.1} parent=1 // loop_footer_branch
      %26 = sbr.rel target = $region3
    $region8: #{_lambda_.1} parent=1 // loop_exit
      _
    %1805 = vsyncpa [#allocation3], 1
    %s1806 = scalar_lea.sflag [#allocation3], 1
    %1807 = vsyncpa %s1806, 1

</llo_original>
